<compile_context>
chip_gen: v5e
topology: v5e:2x2
jax: 0.10.0
libtpu: 0.0.40
codegen_flags: <defaults>
</compile_context>

<pallas_src>
import functools

import jax
import jax.numpy as jnp
from jax import lax
from jax.experimental import pallas as pl
from jax.experimental.pallas import tpu as pltpu


# ----------------------------- kernel helpers --------------------------------


def _layernorm(x, g, b, eps):
    mu = jnp.mean(x, axis=-1, keepdims=True)
    var = jnp.mean((x - mu) ** 2, axis=-1, keepdims=True)
    return (x - mu) * lax.rsqrt(var + eps) * g + b


def _layernorm_padded(y, g, b, eps, n_real):
    # LayerNorm over the first n_real columns of y; columns [n_real:] are exactly zero
    # (zero-padded projection weights/bias), so sums can be corrected analytically.
    n_total = y.shape[-1]
    mu = jnp.sum(y, axis=-1, keepdims=True) / n_real
    d = y - mu
    ssq = jnp.sum(d * d, axis=-1, keepdims=True) - (n_total - n_real) * mu * mu
    var = ssq / n_real
    return d * lax.rsqrt(var + eps) * g + b


# ----------------------------- kernel ----------------------------------------


def vis_proj_kernel(
    x_ref,                       # (1, S, H)  full sequence for this batch row
    ln1_g, ln1_b,
    wq, bq, wk, bk, wv, bv, wo, bo,
    ln2_g, ln2_b,
    w1, b1, w2, b2,
    wp, bp, lnp_g, lnp_b,
    o_ref,                       # (1, TS, Lp)
    k_scr,                       # (S, H) bf16  -- cached K, carries across s tiles
    v_scr,                       # (S, H) bf16  -- cached V
    attn_scr,                    # (TS, H) bf16 -- per-head attention outputs
    *,
    num_heads: int,
    head_dim: int,
    seq_tile: int,
    ln_eps: float,
    lang_dim: int,
):
    f32 = jnp.float32
    bf16 = jnp.bfloat16
    s_idx = pl.program_id(1)

    # ---- fill K/V cache once per batch row (s grid axis is "arbitrary") ----
    @pl.when(s_idx == 0)
    def _():
        xf = x_ref[0].astype(f32)                                        # (S, H)
        h1f = _layernorm(xf, ln1_g[...], ln1_b[...], ln_eps).astype(bf16)
        k_scr[...] = (jnp.dot(h1f, wk[...], preferred_element_type=f32)
                      + bk[...]).astype(bf16)
        v_scr[...] = (jnp.dot(h1f, wv[...], preferred_element_type=f32)
                      + bv[...]).astype(bf16)

    # ---- query tile: slice rows out of the resident full-sequence block ----
    q_start = pl.multiple_of(s_idx * seq_tile, seq_tile)
    xq = x_ref[0, pl.ds(q_start, seq_tile), :].astype(f32)               # (TS, H)
    h1q = _layernorm(xq, ln1_g[...], ln1_b[...], ln_eps).astype(bf16)

    # full-width Q projection (scale folded into wq/bq in the prepare step)
    q_full = jnp.dot(h1q, wq[...], preferred_element_type=f32) + bq[...]  # (TS, H) f32

    # ---- per-head score / softmax / PV; statically unrolled so the scheduler can overlap
    #      the next head's MXU pushes with this head's softmax (VPU/EUP) work.  Each head's
    #      intermediates end at the attn_scr store, so live ranges stay bounded.
    for h in range(num_heads):
        sl = slice(h * head_dim, (h + 1) * head_dim)
        q_h = q_full[:, sl].astype(bf16)                                 # (TS, hd)
        k_h = k_scr[:, sl]                                               # (S, hd) bf16
        v_h = v_scr[:, sl]                                               # (S, hd) bf16

        s = lax.dot_general(q_h, k_h, (((1,), (1,)), ((), ())),
                            preferred_element_type=f32)                  # (TS, S)
        s = s - jnp.max(s, axis=-1, keepdims=True)
        p = jnp.exp(s)
        p = p * pl.reciprocal(jnp.sum(p, axis=-1, keepdims=True), approx=True)

        o_h = jnp.dot(p.astype(bf16), v_h, preferred_element_type=f32)   # (TS, hd)
        attn_scr[:, sl] = o_h.astype(bf16)

    # ---- single full-width output projection ----
    attn = jnp.dot(attn_scr[...], wo[...], preferred_element_type=f32) + bo[...]
    h = xq + attn                                                        # residual (f32)

    # ---- layer_norm2 + MLP (quick_gelu) + residual ----
    h2 = _layernorm(h, ln2_g[...], ln2_b[...], ln_eps)
    m = jnp.dot(h2.astype(bf16), w1[...], preferred_element_type=f32) + b1[...]
    m = m * jax.nn.sigmoid(1.702 * m)                                    # quick_gelu (f32)
    m = jnp.dot(m.astype(bf16), w2[...], preferred_element_type=f32) + b2[...]
    h = h + m

    # ---- projection: Linear(hidden, lang_dim) + LayerNorm(eps=1e-12), lane-padded ----
    y = jnp.dot(h.astype(bf16), wp[...], preferred_element_type=f32) + bp[...]   # (TS, Lp)
    y = _layernorm_padded(y, lnp_g[...], lnp_b[...], 1e-12, lang_dim)

    o_ref[0] = y.astype(o_ref.dtype)


# ----------------------------- one-time weight prep ---------------------------


def prepare_vis_proj_params(params, *, num_heads):
    """Transpose to (in,out), fold the q-scale, pad lang_dim to a 128 multiple, cast to bf16."""
    H = params["wq"].shape[1]
    hd = H // num_heads
    scale = hd ** -0.5
    inter = params["w1"].shape[0]
    L = params["wp"].shape[0]
    Lp = ((L + 127) // 128) * 128

    tb = lambda w: jnp.transpose(w).astype(jnp.bfloat16)           # (out,in) -> (in,out) bf16
    r = lambda v: v.reshape(1, -1).astype(jnp.float32)             # biases / LN params f32

    wq = (jnp.transpose(params["wq"]).astype(jnp.float32) * scale).astype(jnp.bfloat16)
    bq = (params["bq"].astype(jnp.float32) * scale).reshape(1, -1)

    wp_t = jnp.transpose(params["wp"]).astype(jnp.float32)          # (H, L)
    wp_pad = jnp.zeros((H, Lp), jnp.float32).at[:, :L].set(wp_t).astype(jnp.bfloat16)
    pad_vec = lambda v: jnp.zeros((1, Lp), jnp.float32).at[0, :L].set(v.astype(jnp.float32))

    tensors = [
        r(params["ln1_g"]), r(params["ln1_b"]),
        wq, bq, tb(params["wk"]), r(params["bk"]), tb(params["wv"]), r(params["bv"]),
        tb(params["wo"]), r(params["bo"]),
        r(params["ln2_g"]), r(params["ln2_b"]),
        tb(params["w1"]), r(params["b1"]), tb(params["w2"]), r(params["b2"]),
        wp_pad, pad_vec(params["bp"]), pad_vec(params["lnp_g"]), pad_vec(params["lnp_b"]),
    ]
    return {
        "tensors": tensors,
        "hidden": H,
        "num_heads": num_heads,
        "head_dim": hd,
        "intermediate": inter,
        "lang_dim": L,
        "lang_dim_padded": Lp,
    }


# ----------------------------- wrapper ---------------------------------------


def vis_projection_vit(x, prepared, *, ln_eps=1e-5, seq_tile=None):
    tensors = prepared["tensors"]
    num_heads = prepared["num_heads"]
    hd = prepared["head_dim"]
    inter = prepared["intermediate"]
    L = prepared["lang_dim"]
    Lp = prepared["lang_dim_padded"]

    B, S, H = x.shape
    assert H == prepared["hidden"]

    if seq_tile is None:
        if S % 256 == 0:
            seq_tile = 256
        elif S % 128 == 0:
            seq_tile = 128
        else:
            seq_tile = S
    assert S % seq_tile == 0, "pad S to a multiple of the sequence tile (and add a key mask)"
    assert seq_tile == S or seq_tile % 8 == 0
    n_s_tiles = S // seq_tile

    # ---- VMEM budget: double-buffered inputs/outputs + scratch + activations, clamped
    #      to the device's actual VMEM capacity (v7x is 64 MiB/TC).
    itemsz = x.dtype.itemsize
    param_bytes = sum(int(p.size) * p.dtype.itemsize for p in tensors)
    x_block = S * H * itemsz
    out_block = seq_tile * Lp * itemsz
    scratch_bytes = 2 * (2 * S * H + seq_tile * H)                  # bf16 scratches
    act_bytes = 4 * (seq_tile * S + seq_tile * inter
                     + 8 * seq_tile * H + 2 * seq_tile * Lp + 2 * S * H)
    est = 2 * (param_bytes + x_block + out_block) + scratch_bytes + act_bytes + (4 << 20)
    try:
        cap = int(pltpu.get_tpu_info().vmem_capacity_bytes)
    except Exception:
        cap = 64 << 20
    if cap <= (16 << 20):
        cap = 64 << 20
    vmem_limit = int(min(max(est, 32 << 20), cap - (4 << 20)))

    def const_spec(p):
        nd = p.ndim
        return pl.BlockSpec(p.shape, lambda b, s, _nd=nd: (0,) * _nd)

    in_specs = [
        pl.BlockSpec((1, S, H), lambda b, s: (b, 0, 0)),            # full sequence, resident per b
    ] + [const_spec(p) for p in tensors]

    kernel = functools.partial(
        vis_proj_kernel,
        num_heads=num_heads, head_dim=hd, seq_tile=seq_tile,
        ln_eps=ln_eps, lang_dim=L,
    )

    out = pl.pallas_call(
        kernel,
        out_shape=jax.ShapeDtypeStruct((B, S, Lp), x.dtype),
        grid_spec=pltpu.PrefetchScalarGridSpec(
            num_scalar_prefetch=0,
            grid=(B, n_s_tiles),
            in_specs=in_specs,
            out_specs=pl.BlockSpec((1, seq_tile, Lp), lambda b, s: (b, s, 0)),
            scratch_shapes=[
                pltpu.VMEM((S, H), jnp.bfloat16),        # K cache
                pltpu.VMEM((S, H), jnp.bfloat16),        # V cache
                pltpu.VMEM((seq_tile, H), jnp.bfloat16), # per-head attention outputs
            ],
        ),
        compiler_params=pltpu.CompilerParams(
            # K/V scratch carries across the s axis -> it must be "arbitrary";
            # B stays "parallel" (megacore on v7x needs B >= 2 or an extra parallel axis).
            dimension_semantics=("parallel", "arbitrary"),
            vmem_limit_bytes=vmem_limit,
        ),
    )(x, *tensors)

    return out[..., :L] if Lp != L else out


# ----------------------------- reference (pure JAX, f32) ----------------------


def reference_forward(x, params, *, num_heads, ln_eps=1e-5):
    def ln(v, g, b, eps):
        mu = jnp.mean(v, axis=-1, keepdims=True)
        var = jnp.mean((v - mu) ** 2, axis=-1, keepdims=True)
        return (v - mu) / jnp.sqrt(var + eps) * g + b

    B, S, H = x.shape
    hd = H // num_heads
    h1 = ln(x, params["ln1_g"], params["ln1_b"], ln_eps)
    q = h1 @ params["wq"].T + params["bq"]
    k = h1 @ params["wk"].T + params["bk"]
    v = h1 @ params["wv"].T + params["bv"]
    q = q * (hd ** -0.5)
    q = q.reshape(B, S, num_heads, hd).transpose(0, 2, 1, 3)
    k = k.reshape(B, S, num_heads, hd).transpose(0, 2, 1, 3)
    v = v.reshape(B, S, num_heads, hd).transpose(0, 2, 1, 3)
    s = jnp.einsum("bhqd,bhkd->bhqk", q, k)
    p = jax.nn.softmax(s, axis=-1)
    a = jnp.einsum("bhqk,bhkd->bhqd", p, v)
    a = a.transpose(0, 2, 1, 3).reshape(B, S, H)
    a = a @ params["wo"].T + params["bo"]
    h = x + a
    h2 = ln(h, params["ln2_g"], params["ln2_b"], ln_eps)
    m = h2 @ params["w1"].T + params["b1"]
    m = m * jax.nn.sigmoid(1.702 * m)
    m = m @ params["w2"].T + params["b2"]
    h = h + m
    y = h @ params["wp"].T + params["bp"]
    return ln(y, params["lnp_g"], params["lnp_b"], 1e-12)


# ----------------------------- main -------------------------------------------


if __name__ == "__main__":
    # Small synthetic config: hidden=32, heads=4, intermediate=64, lang_dim=48.
    # S=16 with seq_tile=8 so the K/V-cache carry across query tiles is exercised.
    B, S, H = 2, 16, 32
    NUM_HEADS = 4
    INTERMEDIATE = 64
    LANG_DIM = 48

    key = jax.random.PRNGKey(0)
    keys = jax.random.split(key, 16)

    def w(k, shape, scale=0.02):
        return (scale * jax.random.normal(k, shape)).astype(jnp.float32)

    params = {
        "ln1_g": 1.0 + w(keys[0], (H,)), "ln1_b": w(keys[1], (H,)),
        "wq": w(keys[2], (H, H)), "bq": w(keys[3], (H,)),
        "wk": w(keys[4], (H, H)), "bk": w(keys[5], (H,)),
        "wv": w(keys[6], (H, H)), "bv": w(keys[7], (H,)),
        "wo": w(keys[8], (H, H)), "bo": w(keys[9], (H,)),
        "ln2_g": 1.0 + w(keys[10], (H,)), "ln2_b": w(keys[11], (H,)),
        "w1": w(keys[12], (INTERMEDIATE, H)), "b1": w(keys[13], (INTERMEDIATE,)),
        "w2": w(keys[14], (H, INTERMEDIATE)), "b2": w(keys[15], (H,)),
    }
    k2 = jax.random.split(jax.random.PRNGKey(1), 4)
    params.update({
        "wp": w(k2[0], (LANG_DIM, H)), "bp": w(k2[1], (LANG_DIM,)),
        "lnp_g": 1.0 + w(k2[2], (LANG_DIM,)), "lnp_b": w(k2[3], (LANG_DIM,)),
    })

    x = jax.random.normal(jax.random.PRNGKey(42), (B, S, H), dtype=jnp.float32)

    prepared = prepare_vis_proj_params(params, num_heads=NUM_HEADS)
    out = vis_projection_vit(x, prepared, seq_tile=8)
    out = jax.block_until_ready(out)

    ref = reference_forward(x, params, num_heads=NUM_HEADS)
    assert out.shape == (B, S, LANG_DIM), out.shape
    # Tolerance loosened vs. pure-f32: matmul operands are bf16 (f32 accumulation) and the
    # softmax reciprocal is the approx (EUP) path; LN/residual/softmax math stays f32.
    assert jnp.allclose(out, ref, atol=3e-2, rtol=3e-2), float(
        jnp.max(jnp.abs(out - ref))
    )

    print("KERNEL_OK")
</pallas_src>

<mosaic_0001>
module attributes {stable_mosaic.version = 11 : i64} {
  func.func @vis_proj_kernel(%arg0: i32, %arg1: i32, %arg2: memref<1x16x32xf32, #tpu.memory_space<vmem>>, %arg3: memref<1x32xf32, #tpu.memory_space<vmem>>, %arg4: memref<1x32xf32, #tpu.memory_space<vmem>>, %arg5: memref<32x32xbf16, #tpu.memory_space<vmem>>, %arg6: memref<1x32xf32, #tpu.memory_space<vmem>>, %arg7: memref<32x32xbf16, #tpu.memory_space<vmem>>, %arg8: memref<1x32xf32, #tpu.memory_space<vmem>>, %arg9: memref<32x32xbf16, #tpu.memory_space<vmem>>, %arg10: memref<1x32xf32, #tpu.memory_space<vmem>>, %arg11: memref<32x32xbf16, #tpu.memory_space<vmem>>, %arg12: memref<1x32xf32, #tpu.memory_space<vmem>>, %arg13: memref<1x32xf32, #tpu.memory_space<vmem>>, %arg14: memref<1x32xf32, #tpu.memory_space<vmem>>, %arg15: memref<32x64xbf16, #tpu.memory_space<vmem>>, %arg16: memref<1x64xf32, #tpu.memory_space<vmem>>, %arg17: memref<64x32xbf16, #tpu.memory_space<vmem>>, %arg18: memref<1x32xf32, #tpu.memory_space<vmem>>, %arg19: memref<32x128xbf16, #tpu.memory_space<vmem>>, %arg20: memref<1x128xf32, #tpu.memory_space<vmem>>, %arg21: memref<1x128xf32, #tpu.memory_space<vmem>>, %arg22: memref<1x128xf32, #tpu.memory_space<vmem>>, %arg23: memref<1x8x128xf32, #tpu.memory_space<vmem>>, %arg24: memref<16x32xbf16, #tpu.memory_space<vmem>>, %arg25: memref<16x32xbf16, #tpu.memory_space<vmem>>, %arg26: memref<8x32xbf16, #tpu.memory_space<vmem>>) attributes {dimension_semantics = [#tpu.dimension_semantics<parallel>, #tpu.dimension_semantics<arbitrary>], iteration_bounds = array<i64: 2, 2>, scalar_prefetch = 0 : i64, scratch_operands = 3 : i64, tpu.core_type = #tpu.core_type<tc>, window_params = [{transform_indices = @transform_0, window_bounds = array<i64: 1, 16, 32>}, {pipeline_mode = #tpu.pipeline_mode<synchronous>, transform_indices = @transform_1, window_bounds = array<i64: 1, 32>}, {pipeline_mode = #tpu.pipeline_mode<synchronous>, transform_indices = @transform_2, window_bounds = array<i64: 1, 32>}, {pipeline_mode = #tpu.pipeline_mode<synchronous>, transform_indices = @transform_3, window_bounds = array<i64: 32, 32>}, {pipeline_mode = #tpu.pipeline_mode<synchronous>, transform_indices = @transform_4, window_bounds = array<i64: 1, 32>}, {pipeline_mode = #tpu.pipeline_mode<synchronous>, transform_indices = @transform_5, window_bounds = array<i64: 32, 32>}, {pipeline_mode = #tpu.pipeline_mode<synchronous>, transform_indices = @transform_6, window_bounds = array<i64: 1, 32>}, {pipeline_mode = #tpu.pipeline_mode<synchronous>, transform_indices = @transform_7, window_bounds = array<i64: 32, 32>}, {pipeline_mode = #tpu.pipeline_mode<synchronous>, transform_indices = @transform_8, window_bounds = array<i64: 1, 32>}, {pipeline_mode = #tpu.pipeline_mode<synchronous>, transform_indices = @transform_9, window_bounds = array<i64: 32, 32>}, {pipeline_mode = #tpu.pipeline_mode<synchronous>, transform_indices = @transform_10, window_bounds = array<i64: 1, 32>}, {pipeline_mode = #tpu.pipeline_mode<synchronous>, transform_indices = @transform_11, window_bounds = array<i64: 1, 32>}, {pipeline_mode = #tpu.pipeline_mode<synchronous>, transform_indices = @transform_12, window_bounds = array<i64: 1, 32>}, {pipeline_mode = #tpu.pipeline_mode<synchronous>, transform_indices = @transform_13, window_bounds = array<i64: 32, 64>}, {pipeline_mode = #tpu.pipeline_mode<synchronous>, transform_indices = @transform_14, window_bounds = array<i64: 1, 64>}, {pipeline_mode = #tpu.pipeline_mode<synchronous>, transform_indices = @transform_15, window_bounds = array<i64: 64, 32>}, {pipeline_mode = #tpu.pipeline_mode<synchronous>, transform_indices = @transform_16, window_bounds = array<i64: 1, 32>}, {pipeline_mode = #tpu.pipeline_mode<synchronous>, transform_indices = @transform_17, window_bounds = array<i64: 32, 128>}, {pipeline_mode = #tpu.pipeline_mode<synchronous>, transform_indices = @transform_18, window_bounds = array<i64: 1, 128>}, {pipeline_mode = #tpu.pipeline_mode<synchronous>, transform_indices = @transform_19, window_bounds = array<i64: 1, 128>}, {pipeline_mode = #tpu.pipeline_mode<synchronous>, transform_indices = @transform_20, window_bounds = array<i64: 1, 128>}, {transform_indices = @transform_21, window_bounds = array<i64: 1, 8, 128>}]} {
    %c0_i32 = arith.constant 0 : i32
    %0 = arith.cmpi eq, %arg1, %c0_i32 : i32
    %1 = arith.extui %0 : i1 to i32
    %c0_i32_0 = arith.constant 0 : i32
    %2 = arith.cmpi ne, %1, %c0_i32_0 : i32
    scf.if %2 {
      %c0_98 = arith.constant 0 : index
      %c0_99 = arith.constant 0 : index
      %c0_100 = arith.constant 0 : index
      %201 = vector.load %arg2[%c0_98, %c0_99, %c0_100] : memref<1x16x32xf32, #tpu.memory_space<vmem>>, vector<1x16x32xf32>
      %202 = vector.shape_cast %201 : vector<1x16x32xf32> to vector<16x32xf32>
      %c0_101 = arith.constant 0 : index
      %c0_102 = arith.constant 0 : index
      %203 = vector.load %arg3[%c0_101, %c0_102] : memref<1x32xf32, #tpu.memory_space<vmem>>, vector<1x32xf32>
      %c0_103 = arith.constant 0 : index
      %c0_104 = arith.constant 0 : index
      %204 = vector.load %arg4[%c0_103, %c0_104] : memref<1x32xf32, #tpu.memory_space<vmem>>, vector<1x32xf32>
      %cst_105 = arith.constant dense<0.000000e+00> : vector<16xf32>
      %205 = vector.multi_reduction <add>, %202, %cst_105 [1] : vector<16x32xf32> to vector<16xf32>
      %206 = vector.shape_cast %205 : vector<16xf32> to vector<16x1xf32>
      %cst_106 = arith.constant 3.200000e+01 : f32
      %207 = vector.broadcast %cst_106 : f32 to vector<16x1xf32>
      %208 = arith.divf %206, %207 : vector<16x1xf32>
      %209 = vector.broadcast %208 : vector<16x1xf32> to vector<16x32xf32>
      %210 = arith.subf %202, %209 : vector<16x32xf32>
      %211 = arith.mulf %210, %210 : vector<16x32xf32>
      %cst_107 = arith.constant dense<0.000000e+00> : vector<16xf32>
      %212 = vector.multi_reduction <add>, %211, %cst_107 [1] : vector<16x32xf32> to vector<16xf32>
      %213 = vector.shape_cast %212 : vector<16xf32> to vector<16x1xf32>
      %cst_108 = arith.constant 3.200000e+01 : f32
      %214 = vector.broadcast %cst_108 : f32 to vector<16x1xf32>
      %215 = arith.divf %213, %214 : vector<16x1xf32>
      %216 = vector.broadcast %208 : vector<16x1xf32> to vector<16x32xf32>
      %217 = arith.subf %202, %216 : vector<16x32xf32>
      %cst_109 = arith.constant 9.99999974E-6 : f32
      %218 = vector.broadcast %cst_109 : f32 to vector<16x1xf32>
      %219 = arith.addf %215, %218 : vector<16x1xf32>
      %220 = math.rsqrt %219 : vector<16x1xf32>
      %221 = vector.broadcast %220 : vector<16x1xf32> to vector<16x32xf32>
      %222 = arith.mulf %217, %221 : vector<16x32xf32>
      %223 = vector.broadcast %203 : vector<1x32xf32> to vector<16x32xf32>
      %224 = arith.mulf %222, %223 : vector<16x32xf32>
      %225 = vector.broadcast %204 : vector<1x32xf32> to vector<16x32xf32>
      %226 = arith.addf %224, %225 : vector<16x32xf32>
      %227 = arith.truncf %226 : vector<16x32xf32> to vector<16x32xbf16>
      %c0_110 = arith.constant 0 : index
      %c0_111 = arith.constant 0 : index
      %228 = vector.load %arg7[%c0_110, %c0_111] : memref<32x32xbf16, #tpu.memory_space<vmem>>, vector<32x32xbf16>
      %cst_112 = arith.constant dense<0.000000e+00> : vector<16x32xf32>
      %229 = tpu.matmul %227, %228, %cst_112 {dimension_numbers = #tpu.dot_dimension_numbers<[1], [0], [0], [1], [0, 0, 1, 1], [], []>} : vector<16x32xbf16>, vector<32x32xbf16>, vector<16x32xf32> -> vector<16x32xf32>
      %c0_113 = arith.constant 0 : index
      %c0_114 = arith.constant 0 : index
      %230 = vector.load %arg8[%c0_113, %c0_114] : memref<1x32xf32, #tpu.memory_space<vmem>>, vector<1x32xf32>
      %231 = vector.broadcast %230 : vector<1x32xf32> to vector<16x32xf32>
      %232 = arith.addf %229, %231 : vector<16x32xf32>
      %233 = arith.truncf %232 : vector<16x32xf32> to vector<16x32xbf16>
      %c0_115 = arith.constant 0 : index
      %c0_116 = arith.constant 0 : index
      %234 = vector.load %arg24[%c0_115, %c0_116] : memref<16x32xbf16, #tpu.memory_space<vmem>>, vector<16x32xbf16>
      tpu.vector_store %arg24[%c0_115, %c0_116], %233 {strides = array<i32>} : memref<16x32xbf16, #tpu.memory_space<vmem>>, vector<16x32xbf16>,
      %c0_117 = arith.constant 0 : index
      %c0_118 = arith.constant 0 : index
      %235 = vector.load %arg9[%c0_117, %c0_118] : memref<32x32xbf16, #tpu.memory_space<vmem>>, vector<32x32xbf16>
      %cst_119 = arith.constant dense<0.000000e+00> : vector<16x32xf32>
      %236 = tpu.matmul %227, %235, %cst_119 {dimension_numbers = #tpu.dot_dimension_numbers<[1], [0], [0], [1], [0, 0, 1, 1], [], []>} : vector<16x32xbf16>, vector<32x32xbf16>, vector<16x32xf32> -> vector<16x32xf32>
      %c0_120 = arith.constant 0 : index
      %c0_121 = arith.constant 0 : index
      %237 = vector.load %arg10[%c0_120, %c0_121] : memref<1x32xf32, #tpu.memory_space<vmem>>, vector<1x32xf32>
      %238 = vector.broadcast %237 : vector<1x32xf32> to vector<16x32xf32>
      %239 = arith.addf %236, %238 : vector<16x32xf32>
      %240 = arith.truncf %239 : vector<16x32xf32> to vector<16x32xbf16>
      %c0_122 = arith.constant 0 : index
      %c0_123 = arith.constant 0 : index
      %241 = vector.load %arg25[%c0_122, %c0_123] : memref<16x32xbf16, #tpu.memory_space<vmem>>, vector<16x32xbf16>
      tpu.vector_store %arg25[%c0_122, %c0_123], %240 {strides = array<i32>} : memref<16x32xbf16, #tpu.memory_space<vmem>>, vector<16x32xbf16>,
    } else {
    }
    %c8_i32 = arith.constant 8 : i32
    %3 = arith.muli %arg1, %c8_i32 : i32
    %4 = tpu.assume_multiple %3, 8 : i32
    %c0 = arith.constant 0 : index
    %5 = arith.index_cast %4 : i32 to index
    %c0_1 = arith.constant 0 : index
    %6 = vector.load %arg2[%c0, %5, %c0_1] : memref<1x16x32xf32, #tpu.memory_space<vmem>>, vector<1x8x32xf32>
    %7 = vector.shape_cast %6 : vector<1x8x32xf32> to vector<8x32xf32>
    %c0_2 = arith.constant 0 : index
    %c0_3 = arith.constant 0 : index
    %8 = vector.load %arg3[%c0_2, %c0_3] : memref<1x32xf32, #tpu.memory_space<vmem>>, vector<1x32xf32>
    %c0_4 = arith.constant 0 : index
    %c0_5 = arith.constant 0 : index
    %9 = vector.load %arg4[%c0_4, %c0_5] : memref<1x32xf32, #tpu.memory_space<vmem>>, vector<1x32xf32>
    %cst = arith.constant dense<0.000000e+00> : vector<8xf32>
    %10 = vector.multi_reduction <add>, %7, %cst [1] : vector<8x32xf32> to vector<8xf32>
    %11 = vector.shape_cast %10 : vector<8xf32> to vector<8x1xf32>
    %cst_6 = arith.constant 3.200000e+01 : f32
    %12 = vector.broadcast %cst_6 : f32 to vector<8x1xf32>
    %13 = arith.divf %11, %12 : vector<8x1xf32>
    %14 = vector.broadcast %13 : vector<8x1xf32> to vector<8x32xf32>
    %15 = arith.subf %7, %14 : vector<8x32xf32>
    %16 = arith.mulf %15, %15 : vector<8x32xf32>
    %cst_7 = arith.constant dense<0.000000e+00> : vector<8xf32>
    %17 = vector.multi_reduction <add>, %16, %cst_7 [1] : vector<8x32xf32> to vector<8xf32>
    %18 = vector.shape_cast %17 : vector<8xf32> to vector<8x1xf32>
    %cst_8 = arith.constant 3.200000e+01 : f32
    %19 = vector.broadcast %cst_8 : f32 to vector<8x1xf32>
    %20 = arith.divf %18, %19 : vector<8x1xf32>
    %21 = vector.broadcast %13 : vector<8x1xf32> to vector<8x32xf32>
    %22 = arith.subf %7, %21 : vector<8x32xf32>
    %cst_9 = arith.constant 9.99999974E-6 : f32
    %23 = vector.broadcast %cst_9 : f32 to vector<8x1xf32>
    %24 = arith.addf %20, %23 : vector<8x1xf32>
    %25 = math.rsqrt %24 : vector<8x1xf32>
    %26 = vector.broadcast %25 : vector<8x1xf32> to vector<8x32xf32>
    %27 = arith.mulf %22, %26 : vector<8x32xf32>
    %28 = vector.broadcast %8 : vector<1x32xf32> to vector<8x32xf32>
    %29 = arith.mulf %27, %28 : vector<8x32xf32>
    %30 = vector.broadcast %9 : vector<1x32xf32> to vector<8x32xf32>
    %31 = arith.addf %29, %30 : vector<8x32xf32>
    %32 = arith.truncf %31 : vector<8x32xf32> to vector<8x32xbf16>
    %c0_10 = arith.constant 0 : index
    %c0_11 = arith.constant 0 : index
    %33 = vector.load %arg5[%c0_10, %c0_11] : memref<32x32xbf16, #tpu.memory_space<vmem>>, vector<32x32xbf16>
    %cst_12 = arith.constant dense<0.000000e+00> : vector<8x32xf32>
    %34 = tpu.matmul %32, %33, %cst_12 {dimension_numbers = #tpu.dot_dimension_numbers<[1], [0], [0], [1], [0, 0, 1, 1], [], []>} : vector<8x32xbf16>, vector<32x32xbf16>, vector<8x32xf32> -> vector<8x32xf32>
    %c0_13 = arith.constant 0 : index
    %c0_14 = arith.constant 0 : index
    %35 = vector.load %arg6[%c0_13, %c0_14] : memref<1x32xf32, #tpu.memory_space<vmem>>, vector<1x32xf32>
    %36 = vector.broadcast %35 : vector<1x32xf32> to vector<8x32xf32>
    %37 = arith.addf %34, %36 : vector<8x32xf32>
    %38 = vector.extract_strided_slice %37 {offsets = [0, 0], sizes = [8, 8], strides = [1, 1]} : vector<8x32xf32> to vector<8x8xf32>
    %39 = arith.truncf %38 : vector<8x8xf32> to vector<8x8xbf16>
    %c0_15 = arith.constant 0 : index
    %c0_16 = arith.constant 0 : index
    %40 = vector.load %arg24[%c0_15, %c0_16] : memref<16x32xbf16, #tpu.memory_space<vmem>>, vector<16x8xbf16>
    %c0_17 = arith.constant 0 : index
    %c0_18 = arith.constant 0 : index
    %41 = vector.load %arg25[%c0_17, %c0_18] : memref<16x32xbf16, #tpu.memory_space<vmem>>, vector<16x8xbf16>
    %cst_19 = arith.constant dense<0.000000e+00> : vector<8x16xf32>
    %42 = tpu.matmul %39, %40, %cst_19 {dimension_numbers = #tpu.dot_dimension_numbers<[1], [1], [0], [0], [0, 0, 1, 0], [], []>} : vector<8x8xbf16>, vector<16x8xbf16>, vector<8x16xf32> -> vector<8x16xf32>
    %cst_20 = arith.constant dense<0xFF800000> : vector<8xf32>
    %43 = vector.multi_reduction <maximumf>, %42, %cst_20 [1] : vector<8x16xf32> to vector<8xf32>
    %44 = vector.shape_cast %43 : vector<8xf32> to vector<8x1xf32>
    %45 = vector.broadcast %44 : vector<8x1xf32> to vector<8x16xf32>
    %46 = arith.subf %42, %45 : vector<8x16xf32>
    %47 = math.exp %46 : vector<8x16xf32>
    %cst_21 = arith.constant dense<0.000000e+00> : vector<8xf32>
    %48 = vector.multi_reduction <add>, %47, %cst_21 [1] : vector<8x16xf32> to vector<8xf32>
    %49 = vector.shape_cast %48 : vector<8xf32> to vector<8x1xf32>
    %50 = tpu.reciprocal %49 {approx = true} : vector<8x1xf32> -> vector<8x1xf32>
    %51 = vector.broadcast %50 : vector<8x1xf32> to vector<8x16xf32>
    %52 = arith.mulf %47, %51 : vector<8x16xf32>
    %53 = arith.truncf %52 : vector<8x16xf32> to vector<8x16xbf16>
    %cst_22 = arith.constant dense<0.000000e+00> : vector<8x8xf32>
    %54 = tpu.matmul %53, %41, %cst_22 {dimension_numbers = #tpu.dot_dimension_numbers<[1], [0], [0], [1], [0, 0, 1, 1], [], []>} : vector<8x16xbf16>, vector<16x8xbf16>, vector<8x8xf32> -> vector<8x8xf32>
    %55 = arith.truncf %54 : vector<8x8xf32> to vector<8x8xbf16>
    %c0_23 = arith.constant 0 : index
    %c0_24 = arith.constant 0 : index
    %56 = vector.load %arg26[%c0_23, %c0_24] : memref<8x32xbf16, #tpu.memory_space<vmem>>, vector<8x8xbf16>
    tpu.vector_store %arg26[%c0_23, %c0_24], %55 {strides = array<i32>} : memref<8x32xbf16, #tpu.memory_space<vmem>>, vector<8x8xbf16>,
    %57 = vector.extract_strided_slice %37 {offsets = [0, 8], sizes = [8, 8], strides = [1, 1]} : vector<8x32xf32> to vector<8x8xf32>
    %58 = arith.truncf %57 : vector<8x8xf32> to vector<8x8xbf16>
    %c0_25 = arith.constant 0 : index
    %c8 = arith.constant 8 : index
    %59 = vector.load %arg24[%c0_25, %c8] : memref<16x32xbf16, #tpu.memory_space<vmem>>, vector<16x8xbf16>
    %c0_26 = arith.constant 0 : index
    %c8_27 = arith.constant 8 : index
    %60 = vector.load %arg25[%c0_26, %c8_27] : memref<16x32xbf16, #tpu.memory_space<vmem>>, vector<16x8xbf16>
    %cst_28 = arith.constant dense<0.000000e+00> : vector<8x16xf32>
    %61 = tpu.matmul %58, %59, %cst_28 {dimension_numbers = #tpu.dot_dimension_numbers<[1], [1], [0], [0], [0, 0, 1, 0], [], []>} : vector<8x8xbf16>, vector<16x8xbf16>, vector<8x16xf32> -> vector<8x16xf32>
    %cst_29 = arith.constant dense<0xFF800000> : vector<8xf32>
    %62 = vector.multi_reduction <maximumf>, %61, %cst_29 [1] : vector<8x16xf32> to vector<8xf32>
    %63 = vector.shape_cast %62 : vector<8xf32> to vector<8x1xf32>
    %64 = vector.broadcast %63 : vector<8x1xf32> to vector<8x16xf32>
    %65 = arith.subf %61, %64 : vector<8x16xf32>
    %66 = math.exp %65 : vector<8x16xf32>
    %cst_30 = arith.constant dense<0.000000e+00> : vector<8xf32>
    %67 = vector.multi_reduction <add>, %66, %cst_30 [1] : vector<8x16xf32> to vector<8xf32>
    %68 = vector.shape_cast %67 : vector<8xf32> to vector<8x1xf32>
    %69 = tpu.reciprocal %68 {approx = true} : vector<8x1xf32> -> vector<8x1xf32>
    %70 = vector.broadcast %69 : vector<8x1xf32> to vector<8x16xf32>
    %71 = arith.mulf %66, %70 : vector<8x16xf32>
    %72 = arith.truncf %71 : vector<8x16xf32> to vector<8x16xbf16>
    %cst_31 = arith.constant dense<0.000000e+00> : vector<8x8xf32>
    %73 = tpu.matmul %72, %60, %cst_31 {dimension_numbers = #tpu.dot_dimension_numbers<[1], [0], [0], [1], [0, 0, 1, 1], [], []>} : vector<8x16xbf16>, vector<16x8xbf16>, vector<8x8xf32> -> vector<8x8xf32>
    %74 = arith.truncf %73 : vector<8x8xf32> to vector<8x8xbf16>
    %c0_32 = arith.constant 0 : index
    %c8_33 = arith.constant 8 : index
    %75 = vector.load %arg26[%c0_32, %c8_33] : memref<8x32xbf16, #tpu.memory_space<vmem>>, vector<8x8xbf16>
    tpu.vector_store %arg26[%c0_32, %c8_33], %74 {strides = array<i32>} : memref<8x32xbf16, #tpu.memory_space<vmem>>, vector<8x8xbf16>,
    %76 = vector.extract_strided_slice %37 {offsets = [0, 16], sizes = [8, 8], strides = [1, 1]} : vector<8x32xf32> to vector<8x8xf32>
    %77 = arith.truncf %76 : vector<8x8xf32> to vector<8x8xbf16>
    %c0_34 = arith.constant 0 : index
    %c16 = arith.constant 16 : index
    %78 = vector.load %arg24[%c0_34, %c16] : memref<16x32xbf16, #tpu.memory_space<vmem>>, vector<16x8xbf16>
    %c0_35 = arith.constant 0 : index
    %c16_36 = arith.constant 16 : index
    %79 = vector.load %arg25[%c0_35, %c16_36] : memref<16x32xbf16, #tpu.memory_space<vmem>>, vector<16x8xbf16>
    %cst_37 = arith.constant dense<0.000000e+00> : vector<8x16xf32>
    %80 = tpu.matmul %77, %78, %cst_37 {dimension_numbers = #tpu.dot_dimension_numbers<[1], [1], [0], [0], [0, 0, 1, 0], [], []>} : vector<8x8xbf16>, vector<16x8xbf16>, vector<8x16xf32> -> vector<8x16xf32>
    %cst_38 = arith.constant dense<0xFF800000> : vector<8xf32>
    %81 = vector.multi_reduction <maximumf>, %80, %cst_38 [1] : vector<8x16xf32> to vector<8xf32>
    %82 = vector.shape_cast %81 : vector<8xf32> to vector<8x1xf32>
    %83 = vector.broadcast %82 : vector<8x1xf32> to vector<8x16xf32>
    %84 = arith.subf %80, %83 : vector<8x16xf32>
    %85 = math.exp %84 : vector<8x16xf32>
    %cst_39 = arith.constant dense<0.000000e+00> : vector<8xf32>
    %86 = vector.multi_reduction <add>, %85, %cst_39 [1] : vector<8x16xf32> to vector<8xf32>
    %87 = vector.shape_cast %86 : vector<8xf32> to vector<8x1xf32>
    %88 = tpu.reciprocal %87 {approx = true} : vector<8x1xf32> -> vector<8x1xf32>
    %89 = vector.broadcast %88 : vector<8x1xf32> to vector<8x16xf32>
    %90 = arith.mulf %85, %89 : vector<8x16xf32>
    %91 = arith.truncf %90 : vector<8x16xf32> to vector<8x16xbf16>
    %cst_40 = arith.constant dense<0.000000e+00> : vector<8x8xf32>
    %92 = tpu.matmul %91, %79, %cst_40 {dimension_numbers = #tpu.dot_dimension_numbers<[1], [0], [0], [1], [0, 0, 1, 1], [], []>} : vector<8x16xbf16>, vector<16x8xbf16>, vector<8x8xf32> -> vector<8x8xf32>
    %93 = arith.truncf %92 : vector<8x8xf32> to vector<8x8xbf16>
    %c0_41 = arith.constant 0 : index
    %c16_42 = arith.constant 16 : index
    %94 = vector.load %arg26[%c0_41, %c16_42] : memref<8x32xbf16, #tpu.memory_space<vmem>>, vector<8x8xbf16>
    tpu.vector_store %arg26[%c0_41, %c16_42], %93 {strides = array<i32>} : memref<8x32xbf16, #tpu.memory_space<vmem>>, vector<8x8xbf16>,
    %95 = vector.extract_strided_slice %37 {offsets = [0, 24], sizes = [8, 8], strides = [1, 1]} : vector<8x32xf32> to vector<8x8xf32>
    %96 = arith.truncf %95 : vector<8x8xf32> to vector<8x8xbf16>
    %c0_43 = arith.constant 0 : index
    %c24 = arith.constant 24 : index
    %97 = vector.load %arg24[%c0_43, %c24] : memref<16x32xbf16, #tpu.memory_space<vmem>>, vector<16x8xbf16>
    %c0_44 = arith.constant 0 : index
    %c24_45 = arith.constant 24 : index
    %98 = vector.load %arg25[%c0_44, %c24_45] : memref<16x32xbf16, #tpu.memory_space<vmem>>, vector<16x8xbf16>
    %cst_46 = arith.constant dense<0.000000e+00> : vector<8x16xf32>
    %99 = tpu.matmul %96, %97, %cst_46 {dimension_numbers = #tpu.dot_dimension_numbers<[1], [1], [0], [0], [0, 0, 1, 0], [], []>} : vector<8x8xbf16>, vector<16x8xbf16>, vector<8x16xf32> -> vector<8x16xf32>
    %cst_47 = arith.constant dense<0xFF800000> : vector<8xf32>
    %100 = vector.multi_reduction <maximumf>, %99, %cst_47 [1] : vector<8x16xf32> to vector<8xf32>
    %101 = vector.shape_cast %100 : vector<8xf32> to vector<8x1xf32>
    %102 = vector.broadcast %101 : vector<8x1xf32> to vector<8x16xf32>
    %103 = arith.subf %99, %102 : vector<8x16xf32>
    %104 = math.exp %103 : vector<8x16xf32>
    %cst_48 = arith.constant dense<0.000000e+00> : vector<8xf32>
    %105 = vector.multi_reduction <add>, %104, %cst_48 [1] : vector<8x16xf32> to vector<8xf32>
    %106 = vector.shape_cast %105 : vector<8xf32> to vector<8x1xf32>
    %107 = tpu.reciprocal %106 {approx = true} : vector<8x1xf32> -> vector<8x1xf32>
    %108 = vector.broadcast %107 : vector<8x1xf32> to vector<8x16xf32>
    %109 = arith.mulf %104, %108 : vector<8x16xf32>
    %110 = arith.truncf %109 : vector<8x16xf32> to vector<8x16xbf16>
    %cst_49 = arith.constant dense<0.000000e+00> : vector<8x8xf32>
    %111 = tpu.matmul %110, %98, %cst_49 {dimension_numbers = #tpu.dot_dimension_numbers<[1], [0], [0], [1], [0, 0, 1, 1], [], []>} : vector<8x16xbf16>, vector<16x8xbf16>, vector<8x8xf32> -> vector<8x8xf32>
    %112 = arith.truncf %111 : vector<8x8xf32> to vector<8x8xbf16>
    %c0_50 = arith.constant 0 : index
    %c24_51 = arith.constant 24 : index
    %113 = vector.load %arg26[%c0_50, %c24_51] : memref<8x32xbf16, #tpu.memory_space<vmem>>, vector<8x8xbf16>
    tpu.vector_store %arg26[%c0_50, %c24_51], %112 {strides = array<i32>} : memref<8x32xbf16, #tpu.memory_space<vmem>>, vector<8x8xbf16>,
    %c0_52 = arith.constant 0 : index
    %c0_53 = arith.constant 0 : index
    %114 = vector.load %arg26[%c0_52, %c0_53] : memref<8x32xbf16, #tpu.memory_space<vmem>>, vector<8x32xbf16>
    %c0_54 = arith.constant 0 : index
    %c0_55 = arith.constant 0 : index
    %115 = vector.load %arg11[%c0_54, %c0_55] : memref<32x32xbf16, #tpu.memory_space<vmem>>, vector<32x32xbf16>
    %cst_56 = arith.constant dense<0.000000e+00> : vector<8x32xf32>
    %116 = tpu.matmul %114, %115, %cst_56 {dimension_numbers = #tpu.dot_dimension_numbers<[1], [0], [0], [1], [0, 0, 1, 1], [], []>} : vector<8x32xbf16>, vector<32x32xbf16>, vector<8x32xf32> -> vector<8x32xf32>
    %c0_57 = arith.constant 0 : index
    %c0_58 = arith.constant 0 : index
    %117 = vector.load %arg12[%c0_57, %c0_58] : memref<1x32xf32, #tpu.memory_space<vmem>>, vector<1x32xf32>
    %118 = vector.broadcast %117 : vector<1x32xf32> to vector<8x32xf32>
    %119 = arith.addf %116, %118 : vector<8x32xf32>
    %120 = arith.addf %7, %119 : vector<8x32xf32>
    %c0_59 = arith.constant 0 : index
    %c0_60 = arith.constant 0 : index
    %121 = vector.load %arg13[%c0_59, %c0_60] : memref<1x32xf32, #tpu.memory_space<vmem>>, vector<1x32xf32>
    %c0_61 = arith.constant 0 : index
    %c0_62 = arith.constant 0 : index
    %122 = vector.load %arg14[%c0_61, %c0_62] : memref<1x32xf32, #tpu.memory_space<vmem>>, vector<1x32xf32>
    %cst_63 = arith.constant dense<0.000000e+00> : vector<8xf32>
    %123 = vector.multi_reduction <add>, %120, %cst_63 [1] : vector<8x32xf32> to vector<8xf32>
    %124 = vector.shape_cast %123 : vector<8xf32> to vector<8x1xf32>
    %cst_64 = arith.constant 3.200000e+01 : f32
    %125 = vector.broadcast %cst_64 : f32 to vector<8x1xf32>
    %126 = arith.divf %124, %125 : vector<8x1xf32>
    %127 = vector.broadcast %126 : vector<8x1xf32> to vector<8x32xf32>
    %128 = arith.subf %120, %127 : vector<8x32xf32>
    %129 = arith.mulf %128, %128 : vector<8x32xf32>
    %cst_65 = arith.constant dense<0.000000e+00> : vector<8xf32>
    %130 = vector.multi_reduction <add>, %129, %cst_65 [1] : vector<8x32xf32> to vector<8xf32>
    %131 = vector.shape_cast %130 : vector<8xf32> to vector<8x1xf32>
    %cst_66 = arith.constant 3.200000e+01 : f32
    %132 = vector.broadcast %cst_66 : f32 to vector<8x1xf32>
    %133 = arith.divf %131, %132 : vector<8x1xf32>
    %134 = vector.broadcast %126 : vector<8x1xf32> to vector<8x32xf32>
    %135 = arith.subf %120, %134 : vector<8x32xf32>
    %cst_67 = arith.constant 9.99999974E-6 : f32
    %136 = vector.broadcast %cst_67 : f32 to vector<8x1xf32>
    %137 = arith.addf %133, %136 : vector<8x1xf32>
    %138 = math.rsqrt %137 : vector<8x1xf32>
    %139 = vector.broadcast %138 : vector<8x1xf32> to vector<8x32xf32>
    %140 = arith.mulf %135, %139 : vector<8x32xf32>
    %141 = vector.broadcast %121 : vector<1x32xf32> to vector<8x32xf32>
    %142 = arith.mulf %140, %141 : vector<8x32xf32>
    %143 = vector.broadcast %122 : vector<1x32xf32> to vector<8x32xf32>
    %144 = arith.addf %142, %143 : vector<8x32xf32>
    %145 = arith.truncf %144 : vector<8x32xf32> to vector<8x32xbf16>
    %c0_68 = arith.constant 0 : index
    %c0_69 = arith.constant 0 : index
    %146 = vector.load %arg15[%c0_68, %c0_69] : memref<32x64xbf16, #tpu.memory_space<vmem>>, vector<32x64xbf16>
    %cst_70 = arith.constant dense<0.000000e+00> : vector<8x64xf32>
    %147 = tpu.matmul %145, %146, %cst_70 {dimension_numbers = #tpu.dot_dimension_numbers<[1], [0], [0], [1], [0, 0, 1, 1], [], []>} : vector<8x32xbf16>, vector<32x64xbf16>, vector<8x64xf32> -> vector<8x64xf32>
    %c0_71 = arith.constant 0 : index
    %c0_72 = arith.constant 0 : index
    %148 = vector.load %arg16[%c0_71, %c0_72] : memref<1x64xf32, #tpu.memory_space<vmem>>, vector<1x64xf32>
    %149 = vector.broadcast %148 : vector<1x64xf32> to vector<8x64xf32>
    %150 = arith.addf %147, %149 : vector<8x64xf32>
    %cst_73 = arith.constant 1.702000e+00 : f32
    %151 = vector.broadcast %cst_73 : f32 to vector<8x64xf32>
    %152 = arith.mulf %151, %150 : vector<8x64xf32>
    %153 = arith.negf %152 : vector<8x64xf32>
    %154 = math.exp %153 : vector<8x64xf32>
    %cst_74 = arith.constant 1.000000e+00 : f32
    %155 = vector.broadcast %cst_74 : f32 to vector<8x64xf32>
    %156 = arith.addf %155, %154 : vector<8x64xf32>
    %157 = arith.divf %155, %156 : vector<8x64xf32>
    %158 = arith.mulf %150, %157 : vector<8x64xf32>
    %159 = arith.truncf %158 : vector<8x64xf32> to vector<8x64xbf16>
    %c0_75 = arith.constant 0 : index
    %c0_76 = arith.constant 0 : index
    %160 = vector.load %arg17[%c0_75, %c0_76] : memref<64x32xbf16, #tpu.memory_space<vmem>>, vector<64x32xbf16>
    %cst_77 = arith.constant dense<0.000000e+00> : vector<8x32xf32>
    %161 = tpu.matmul %159, %160, %cst_77 {dimension_numbers = #tpu.dot_dimension_numbers<[1], [0], [0], [1], [0, 0, 1, 1], [], []>} : vector<8x64xbf16>, vector<64x32xbf16>, vector<8x32xf32> -> vector<8x32xf32>
    %c0_78 = arith.constant 0 : index
    %c0_79 = arith.constant 0 : index
    %162 = vector.load %arg18[%c0_78, %c0_79] : memref<1x32xf32, #tpu.memory_space<vmem>>, vector<1x32xf32>
    %163 = vector.broadcast %162 : vector<1x32xf32> to vector<8x32xf32>
    %164 = arith.addf %161, %163 : vector<8x32xf32>
    %165 = arith.addf %120, %164 : vector<8x32xf32>
    %166 = arith.truncf %165 : vector<8x32xf32> to vector<8x32xbf16>
    %c0_80 = arith.constant 0 : index
    %c0_81 = arith.constant 0 : index
    %167 = vector.load %arg19[%c0_80, %c0_81] : memref<32x128xbf16, #tpu.memory_space<vmem>>, vector<32x128xbf16>
    %cst_82 = arith.constant dense<0.000000e+00> : vector<8x128xf32>
    %168 = tpu.matmul %166, %167, %cst_82 {dimension_numbers = #tpu.dot_dimension_numbers<[1], [0], [0], [1], [0, 0, 1, 1], [], []>} : vector<8x32xbf16>, vector<32x128xbf16>, vector<8x128xf32> -> vector<8x128xf32>
    %c0_83 = arith.constant 0 : index
    %c0_84 = arith.constant 0 : index
    %169 = vector.load %arg20[%c0_83, %c0_84] : memref<1x128xf32, #tpu.memory_space<vmem>>, vector<1x128xf32>
    %170 = vector.broadcast %169 : vector<1x128xf32> to vector<8x128xf32>
    %171 = arith.addf %168, %170 : vector<8x128xf32>
    %c0_85 = arith.constant 0 : index
    %c0_86 = arith.constant 0 : index
    %172 = vector.load %arg21[%c0_85, %c0_86] : memref<1x128xf32, #tpu.memory_space<vmem>>, vector<1x128xf32>
    %c0_87 = arith.constant 0 : index
    %c0_88 = arith.constant 0 : index
    %173 = vector.load %arg22[%c0_87, %c0_88] : memref<1x128xf32, #tpu.memory_space<vmem>>, vector<1x128xf32>
    %cst_89 = arith.constant dense<0.000000e+00> : vector<8xf32>
    %174 = vector.multi_reduction <add>, %171, %cst_89 [1] : vector<8x128xf32> to vector<8xf32>
    %175 = vector.shape_cast %174 : vector<8xf32> to vector<8x1xf32>
    %cst_90 = arith.constant 4.800000e+01 : f32
    %176 = vector.broadcast %cst_90 : f32 to vector<8x1xf32>
    %177 = arith.divf %175, %176 : vector<8x1xf32>
    %178 = vector.broadcast %177 : vector<8x1xf32> to vector<8x128xf32>
    %179 = arith.subf %171, %178 : vector<8x128xf32>
    %180 = arith.mulf %179, %179 : vector<8x128xf32>
    %cst_91 = arith.constant dense<0.000000e+00> : vector<8xf32>
    %181 = vector.multi_reduction <add>, %180, %cst_91 [1] : vector<8x128xf32> to vector<8xf32>
    %182 = vector.shape_cast %181 : vector<8xf32> to vector<8x1xf32>
    %cst_92 = arith.constant 8.000000e+01 : f32
    %183 = vector.broadcast %cst_92 : f32 to vector<8x1xf32>
    %184 = arith.mulf %183, %177 : vector<8x1xf32>
    %185 = arith.mulf %184, %177 : vector<8x1xf32>
    %186 = arith.subf %182, %185 : vector<8x1xf32>
    %cst_93 = arith.constant 4.800000e+01 : f32
    %187 = vector.broadcast %cst_93 : f32 to vector<8x1xf32>
    %188 = arith.divf %186, %187 : vector<8x1xf32>
    %cst_94 = arith.constant 9.99999996E-13 : f32
    %189 = vector.broadcast %cst_94 : f32 to vector<8x1xf32>
    %190 = arith.addf %188, %189 : vector<8x1xf32>
    %191 = math.rsqrt %190 : vector<8x1xf32>
    %192 = vector.broadcast %191 : vector<8x1xf32> to vector<8x128xf32>
    %193 = arith.mulf %179, %192 : vector<8x128xf32>
    %194 = vector.broadcast %172 : vector<1x128xf32> to vector<8x128xf32>
    %195 = arith.mulf %193, %194 : vector<8x128xf32>
    %196 = vector.broadcast %173 : vector<1x128xf32> to vector<8x128xf32>
    %197 = arith.addf %195, %196 : vector<8x128xf32>
    %c0_95 = arith.constant 0 : index
    %c0_96 = arith.constant 0 : index
    %c0_97 = arith.constant 0 : index
    %198 = vector.load %arg23[%c0_95, %c0_96, %c0_97] : memref<1x8x128xf32, #tpu.memory_space<vmem>>, vector<1x8x128xf32>
    %199 = vector.shape_cast %198 : vector<1x8x128xf32> to vector<8x128xf32>
    %200 = vector.shape_cast %197 : vector<8x128xf32> to vector<1x8x128xf32>
    tpu.vector_store %arg23[%c0_95, %c0_96, %c0_97], %200 {strides = array<i32>} : memref<1x8x128xf32, #tpu.memory_space<vmem>>, vector<1x8x128xf32>,
    return
  }
  func.func @transform_0(%arg0: i32, %arg1: i32) -> (i32, i32, i32) {
    %c0_i32 = arith.constant 0 : i32
    %c0_i32_0 = arith.constant 0 : i32
    %c0_i32_1 = arith.constant 0 : i32
    return %arg0, %c0_i32, %c0_i32_0 : i32, i32, i32
  }
  func.func @transform_1(%arg0: i32, %arg1: i32) -> (i32, i32) {
    %c0_i32 = arith.constant 0 : i32
    %c0_i32_0 = arith.constant 0 : i32
    %c0_i32_1 = arith.constant 0 : i32
    return %c0_i32, %c0_i32_0 : i32, i32
  }
  func.func @transform_2(%arg0: i32, %arg1: i32) -> (i32, i32) {
    %c0_i32 = arith.constant 0 : i32
    %c0_i32_0 = arith.constant 0 : i32
    %c0_i32_1 = arith.constant 0 : i32
    return %c0_i32, %c0_i32_0 : i32, i32
  }
  func.func @transform_3(%arg0: i32, %arg1: i32) -> (i32, i32) {
    %c0_i32 = arith.constant 0 : i32
    %c0_i32_0 = arith.constant 0 : i32
    %c0_i32_1 = arith.constant 0 : i32
    return %c0_i32, %c0_i32_0 : i32, i32
  }
  func.func @transform_4(%arg0: i32, %arg1: i32) -> (i32, i32) {
    %c0_i32 = arith.constant 0 : i32
    %c0_i32_0 = arith.constant 0 : i32
    %c0_i32_1 = arith.constant 0 : i32
    return %c0_i32, %c0_i32_0 : i32, i32
  }
  func.func @transform_5(%arg0: i32, %arg1: i32) -> (i32, i32) {
    %c0_i32 = arith.constant 0 : i32
    %c0_i32_0 = arith.constant 0 : i32
    %c0_i32_1 = arith.constant 0 : i32
    return %c0_i32, %c0_i32_0 : i32, i32
  }
  func.func @transform_6(%arg0: i32, %arg1: i32) -> (i32, i32) {
    %c0_i32 = arith.constant 0 : i32
    %c0_i32_0 = arith.constant 0 : i32
    %c0_i32_1 = arith.constant 0 : i32
    return %c0_i32, %c0_i32_0 : i32, i32
  }
  func.func @transform_7(%arg0: i32, %arg1: i32) -> (i32, i32) {
    %c0_i32 = arith.constant 0 : i32
    %c0_i32_0 = arith.constant 0 : i32
    %c0_i32_1 = arith.constant 0 : i32
    return %c0_i32, %c0_i32_0 : i32, i32
  }
  func.func @transform_8(%arg0: i32, %arg1: i32) -> (i32, i32) {
    %c0_i32 = arith.constant 0 : i32
    %c0_i32_0 = arith.constant 0 : i32
    %c0_i32_1 = arith.constant 0 : i32
    return %c0_i32, %c0_i32_0 : i32, i32
  }
  func.func @transform_9(%arg0: i32, %arg1: i32) -> (i32, i32) {
    %c0_i32 = arith.constant 0 : i32
    %c0_i32_0 = arith.constant 0 : i32
    %c0_i32_1 = arith.constant 0 : i32
    return %c0_i32, %c0_i32_0 : i32, i32
  }
  func.func @transform_10(%arg0: i32, %arg1: i32) -> (i32, i32) {
    %c0_i32 = arith.constant 0 : i32
    %c0_i32_0 = arith.constant 0 : i32
    %c0_i32_1 = arith.constant 0 : i32
    return %c0_i32, %c0_i32_0 : i32, i32
  }
  func.func @transform_11(%arg0: i32, %arg1: i32) -> (i32, i32) {
    %c0_i32 = arith.constant 0 : i32
    %c0_i32_0 = arith.constant 0 : i32
    %c0_i32_1 = arith.constant 0 : i32
    return %c0_i32, %c0_i32_0 : i32, i32
  }
  func.func @transform_12(%arg0: i32, %arg1: i32) -> (i32, i32) {
    %c0_i32 = arith.constant 0 : i32
    %c0_i32_0 = arith.constant 0 : i32
    %c0_i32_1 = arith.constant 0 : i32
    return %c0_i32, %c0_i32_0 : i32, i32
  }
  func.func @transform_13(%arg0: i32, %arg1: i32) -> (i32, i32) {
    %c0_i32 = arith.constant 0 : i32
    %c0_i32_0 = arith.constant 0 : i32
    %c0_i32_1 = arith.constant 0 : i32
    return %c0_i32, %c0_i32_0 : i32, i32
  }
  func.func @transform_14(%arg0: i32, %arg1: i32) -> (i32, i32) {
    %c0_i32 = arith.constant 0 : i32
    %c0_i32_0 = arith.constant 0 : i32
    %c0_i32_1 = arith.constant 0 : i32
    return %c0_i32, %c0_i32_0 : i32, i32
  }
  func.func @transform_15(%arg0: i32, %arg1: i32) -> (i32, i32) {
    %c0_i32 = arith.constant 0 : i32
    %c0_i32_0 = arith.constant 0 : i32
    %c0_i32_1 = arith.constant 0 : i32
    return %c0_i32, %c0_i32_0 : i32, i32
  }
  func.func @transform_16(%arg0: i32, %arg1: i32) -> (i32, i32) {
    %c0_i32 = arith.constant 0 : i32
    %c0_i32_0 = arith.constant 0 : i32
    %c0_i32_1 = arith.constant 0 : i32
    return %c0_i32, %c0_i32_0 : i32, i32
  }
  func.func @transform_17(%arg0: i32, %arg1: i32) -> (i32, i32) {
    %c0_i32 = arith.constant 0 : i32
    %c0_i32_0 = arith.constant 0 : i32
    %c0_i32_1 = arith.constant 0 : i32
    return %c0_i32, %c0_i32_0 : i32, i32
  }
  func.func @transform_18(%arg0: i32, %arg1: i32) -> (i32, i32) {
    %c0_i32 = arith.constant 0 : i32
    %c0_i32_0 = arith.constant 0 : i32
    %c0_i32_1 = arith.constant 0 : i32
    return %c0_i32, %c0_i32_0 : i32, i32
  }
  func.func @transform_19(%arg0: i32, %arg1: i32) -> (i32, i32) {
    %c0_i32 = arith.constant 0 : i32
    %c0_i32_0 = arith.constant 0 : i32
    %c0_i32_1 = arith.constant 0 : i32
    return %c0_i32, %c0_i32_0 : i32, i32
  }
  func.func @transform_20(%arg0: i32, %arg1: i32) -> (i32, i32) {
    %c0_i32 = arith.constant 0 : i32
    %c0_i32_0 = arith.constant 0 : i32
    %c0_i32_1 = arith.constant 0 : i32
    return %c0_i32, %c0_i32_0 : i32, i32
  }
  func.func @transform_21(%arg0: i32, %arg1: i32) -> (i32, i32, i32) {
    %c0_i32 = arith.constant 0 : i32
    %c0_i32_0 = arith.constant 0 : i32
    return %arg0, %arg1, %c0_i32 : i32, i32, i32
  }
}

</mosaic_0001>

<llo_original>
// kernel: tpu_custom_call.1
$region0: #{tpu_custom_call.1}
  #allocation0 [shape = 'u32[]', space=smem, size = 0x4, offset = 0x4, fixed_abs, tag = 'smem constant byte address 0x4 - core index']
  #allocation1 [shape = 'u32[72,128]{1,0:T(1,128)}', space=vmem, size = 0x9000, scoped, tag = 'internal scratch']
  #allocation2 [shape = 'bf16[16,32]{1,0:T(8,128)(2,1)}', space=vmem, size = 0x1000, scoped, tag = 'scratch operand']
  #allocation3 [shape = 'bf16[16,32]{1,0:T(8,128)(2,1)}', space=vmem, size = 0x1000, scoped, tag = 'scratch operand']
  #allocation4 [shape = 'bf16[8,32]{1,0:T(8,128)(2,1)}', space=vmem, size = 0x800, scoped, tag = 'scratch operand']
  %s0 = inlined_call_operand.vmem [shape: f32[2,16,32], index: 0, kind: input, shape index: {}]
  %s1 = inlined_call_operand.hbm [shape: f32[1,32], index: 1, kind: input, shape index: {}]
  %s2 = inlined_call_operand.hbm [shape: f32[1,32], index: 2, kind: input, shape index: {}]
  %s3 = inlined_call_operand.vmem [shape: bf16[32,32], index: 3, kind: input, shape index: {}]
  %s4 = inlined_call_operand.hbm [shape: f32[1,32], index: 4, kind: input, shape index: {}]
  %s5 = inlined_call_operand.hbm [shape: bf16[32,32], index: 5, kind: input, shape index: {}]
  %s6 = inlined_call_operand.hbm [shape: f32[1,32], index: 6, kind: input, shape index: {}]
  %s7 = inlined_call_operand.hbm [shape: bf16[32,32], index: 7, kind: input, shape index: {}]
  %s8 = inlined_call_operand.hbm [shape: f32[1,32], index: 8, kind: input, shape index: {}]
  %s9 = inlined_call_operand.hbm [shape: bf16[32,32], index: 9, kind: input, shape index: {}]
  %s10 = inlined_call_operand.hbm [shape: f32[1,32], index: 10, kind: input, shape index: {}]
  %s11 = inlined_call_operand.hbm [shape: f32[1,32], index: 11, kind: input, shape index: {}]
  %s12 = inlined_call_operand.hbm [shape: f32[1,32], index: 12, kind: input, shape index: {}]
  %s13 = inlined_call_operand.hbm [shape: bf16[32,64], index: 13, kind: input, shape index: {}]
  %s14 = inlined_call_operand.hbm [shape: f32[1,64], index: 14, kind: input, shape index: {}]
  %s15 = inlined_call_operand.vmem [shape: bf16[64,32], index: 15, kind: input, shape index: {}]
  %s16 = inlined_call_operand.hbm [shape: f32[1,32], index: 16, kind: input, shape index: {}]
  %s17 = inlined_call_operand.vmem [shape: bf16[32,128], index: 17, kind: input, shape index: {}]
  %s18 = inlined_call_operand.vmem [shape: f32[1,128], index: 18, kind: input, shape index: {}]
  %s19 = inlined_call_operand.vmem [shape: f32[1,128], index: 19, kind: input, shape index: {}]
  %s20 = inlined_call_operand.vmem [shape: f32[1,128], index: 20, kind: input, shape index: {}]
  %s21 = inlined_call_operand.hbm [shape: f32[2,16,128], index: 21, kind: output, shape index: {}]
  %s22 = sld [smem:[#allocation0]]
  $region177: #{tpu_custom_call.1} parent=0
    _
  %s24 = ssub.s32 1, %s22
  %s25 = scalar_select 0, %s24, %s22
  $region1: #{tpu_custom_call.1} parent=0
    #allocation5 [shape = 'u8[512]{0}', space=vmem, size = 0x400, scoped, tag = 'input window, operand 1, single buffered']
    #allocation6 [shape = 's32[2]{0}', space=sflag, size = 0x8, scoped, tag = 'scoped memory for tpu_custom_call.1']
    #allocation7 [shape = 's32[2]{0}', space=sflag, size = 0x8, scoped, tag = 'scoped memory for tpu_custom_call.1']
    #allocation8 [shape = 'u8[512]{0}', space=vmem, size = 0x400, scoped, tag = 'input window, operand 2, single buffered']
    #allocation9 [shape = 's32[1]{0}', space=sflag, size = 0x4, scoped, tag = 'scoped memory for tpu_custom_call.1']
    #allocation10 [shape = 'u8[512]{0}', space=vmem, size = 0x400, scoped, tag = 'input window, operand 4, single buffered']
    #allocation11 [shape = 'u8[8192]{0}', space=vmem, size = 0x2000, scoped, tag = 'input window, operand 5, single buffered']
    #allocation12 [shape = 's32[1]{0}', space=sflag, size = 0x4, scoped, tag = 'scoped memory for tpu_custom_call.1']
    #allocation13 [shape = 'u8[512]{0}', space=vmem, size = 0x400, scoped, tag = 'input window, operand 6, single buffered']
    #allocation14 [shape = 'u8[8192]{0}', space=vmem, size = 0x2000, scoped, tag = 'input window, operand 7, single buffered']
    #allocation15 [shape = 's32[1]{0}', space=sflag, size = 0x4, scoped, tag = 'scoped memory for tpu_custom_call.1']
    #allocation16 [shape = 'u8[512]{0}', space=vmem, size = 0x400, scoped, tag = 'input window, operand 8, single buffered']
    #allocation17 [shape = 'u8[8192]{0}', space=vmem, size = 0x2000, scoped, tag = 'input window, operand 9, single buffered']
    #allocation18 [shape = 's32[1]{0}', space=sflag, size = 0x4, scoped, tag = 'scoped memory for tpu_custom_call.1']
    #allocation19 [shape = 'u8[512]{0}', space=vmem, size = 0x400, scoped, tag = 'input window, operand 10, single buffered']
    #allocation20 [shape = 'u8[512]{0}', space=vmem, size = 0x400, scoped, tag = 'input window, operand 11, single buffered']
    #allocation21 [shape = 's32[1]{0}', space=sflag, size = 0x4, scoped, tag = 'scoped memory for tpu_custom_call.1']
    #allocation22 [shape = 'u8[512]{0}', space=vmem, size = 0x400, scoped, tag = 'input window, operand 12, single buffered']
    #allocation23 [shape = 'u8[8192]{0}', space=vmem, size = 0x2000, scoped, tag = 'input window, operand 13, single buffered']
    #allocation24 [shape = 's32[1]{0}', space=sflag, size = 0x4, scoped, tag = 'scoped memory for tpu_custom_call.1']
    #allocation25 [shape = 'u8[512]{0}', space=vmem, size = 0x400, scoped, tag = 'input window, operand 14, single buffered']
    #allocation26 [shape = 'u8[512]{0}', space=vmem, size = 0x400, scoped, tag = 'input window, operand 16, single buffered']
    #allocation27 [shape = 's32[1]{0}', space=sflag, size = 0x4, scoped, tag = 'scoped memory for tpu_custom_call.1']
    #allocation28 [shape = 'u8[8192]{0}', space=vmem, size = 0x2000, scoped, tag = 'output window, operand 0']
    %26 = vsyncpa [#allocation6], 0
    %27 = vsyncpa [#allocation9], 0
    %28 = vsyncpa [#allocation12], 0
    %29 = vsyncpa [#allocation15], 0
    %30 = vsyncpa [#allocation18], 0
    %31 = vsyncpa [#allocation21], 0
    %32 = vsyncpa [#allocation24], 0
    %33 = vsyncpa [#allocation27], 0
    %34 = vsyncpa [#allocation7], 0
    %s35 = scalar_lea.sflag [#allocation7], 1
    %36 = vsyncpa %s35, 0
    loop: start=0, step=1, limit=6
    $region2: #{tpu_custom_call.1} parent=1 // loop_pre_header
      _
    $region3: #{tpu_custom_call.1} parent=1 // loop_header
      %s38 = sphi 0, %s42
      %p39 = scmp.ge.s32.totalorder %s38, 6
      %s45 = sphi 0, %s57
      %s46 = sphi 0, %s53
      %s47 = sphi 0, %s45
      %s48 = sphi 0, %s46
      %s49 = sphi 0, %s47
      %s50 = sphi 0, %s48
      %s60 = sphi 0, %s62
      %s63 = sphi 0, %s60
      %s64 = sphi 0, %s63
      %s80 = sphi 0, %s64
      %s84 = sphi 0, %s84
      %s86 = sphi 0, %s84
      %s87 = sphi 0, %s86
      %s101 = sphi 0, %s87
      %s105 = sphi 0, %s105
      %s107 = sphi 0, %s105
      %s108 = sphi 0, %s107
      %s122 = sphi 0, %s108
      %s126 = sphi 0, %s126
      %s128 = sphi 0, %s126
      %s129 = sphi 0, %s128
      %s143 = sphi 0, %s129
      %s147 = sphi 0, %s147
      %s149 = sphi 0, %s147
      %s150 = sphi 0, %s149
      %s164 = sphi 0, %s150
      %s168 = sphi 0, %s168
      %s170 = sphi 0, %s168
      %s171 = sphi 0, %s170
      %s185 = sphi 0, %s171
      %s189 = sphi 0, %s189
      %s191 = sphi 0, %s189
      %s192 = sphi 0, %s191
      %s206 = sphi 0, %s192
      %s210 = sphi 0, %s210
      %s212 = sphi 0, %s210
      %s213 = sphi 0, %s212
      %s227 = sphi 0, %s213
      %s231 = sphi 0, %s231
      %s233 = sphi 0, %s231
      %s234 = sphi 0, %s233
      %s248 = sphi 0, %s234
      %s252 = sphi 0, %s252
      %s254 = sphi 0, %s252
      %s255 = sphi 0, %s254
      %s269 = sphi 0, %s255
      %s273 = sphi 0, %s273
      %s275 = sphi 0, %s273
      %s276 = sphi 0, %s275
      %s290 = sphi 0, %s276
      %s294 = sphi 0, %s294
      %s296 = sphi 0, %s294
      %s297 = sphi 0, %s296
      %s311 = sphi 0, %s297
      %s315 = sphi 0, %s315
      %s317 = sphi 0, %s315
      %s318 = sphi 0, %s317
      %s332 = sphi 0, %s318
      %s336 = sphi 0, %s336
      %s338 = sphi 0, %s336
      %s339 = sphi 0, %s338
      %s353 = sphi 0, %s339
      %s357 = sphi 0, %s357
      %s359 = sphi 0, %s357
      %s360 = sphi 0, %s359
      %s374 = sphi 0, %s360
      %s378 = sphi 0, %s378
      %s380 = sphi 0, %s378
      %s381 = sphi 0, %s380
      %s395 = sphi 0, %s381
      %s399 = sphi 0, %s399
      %s401 = sphi 0, %s399
      %s402 = sphi 0, %s401
      %s416 = sphi 0, %s402
      %s420 = sphi 0, %s420
      %s422 = sphi 0, %s420
      %s423 = sphi 0, %s422
      %s437 = sphi 0, %s423
      %s441 = sphi 0, %s441
      %s443 = sphi 0, %s441
      %s444 = sphi 0, %s443
      %s458 = sphi 0, %s444
      %s462 = sphi 0, %s462
      %s464 = sphi 0, %s462
      %s465 = sphi 0, %s464
      %s479 = sphi 0, %s465
      %s483 = sphi 0, %s483
      %s485 = sphi 0, %s483
      %s486 = sphi 0, %s485
      %s500 = sphi 0, %s486
      %s508 = sphi 0, %s510
      %s511 = sphi 0, %s508
      %s512 = sphi 0, %s511
      %s528 = sphi 0, %s512
    $region4: #{tpu_custom_call.1} parent=1 // loop_header_branch
      %41 = sbr.rel (%p39) target = $region8
    $region5: #{tpu_custom_call.1} parent=1 // loop_body
      %s43 = ssub.s32 %s38, 1
      %s44 = ssub.s32 %s38, 2
      %s51 = sadd.s32 1, %s46
      %p52 = scmp.ge.s32.totalorder %s51, 2
      %s53 = scalar_select %p52, 0, %s51
      %s54 = sadd.s32 1, %s45
      %s55 = scalar_select %p52, %s54, %s45
      %p56 = scmp.ge.s32.totalorder %s55, 2
      %s57 = scalar_select %p56, 0, %s55
      %s58 = ssub.s32 %s45, %s57
      %p59 = scmp.eq.s32.totalorder %s58, 0
      %s61 = sadd.s32 %s60, 1
      %s62 = scalar_select %p59, %s60, %s61
      %p65 = pneg %p59
      %p66 = scmp.eq.s32.totalorder %s38, 3
      %p67 = por %p65, %p66
      %p68 = scmp.ne.s32.totalorder %s60, %s63
      %p69 = scmp.eq.s32.totalorder %s38, 0
      %p70 = por %p68, %p69
      %p71 = scmp.ne.s32.totalorder %s60, %s63
      %p72 = scmp.eq.s32.totalorder %s43, 3
      %p73 = por %p71, %p72
      %p74 = scmp.ne.s32.totalorder %s63, %s64
      %p75 = scmp.eq.s32.totalorder %s43, 0
      %p76 = por %p74, %p75
      %p77 = scmp.ne.s32.totalorder %s63, %s64
      %p78 = scmp.eq.s32.totalorder %s44, 3
      %p79 = por %p77, %p78
      %p81 = scmp.ne.s32.totalorder %s64, %s80
      %p82 = scmp.eq.s32.totalorder %s44, 0
      %p83 = por %p81, %p82
      %s85 = sadd.s32 %s84, 1
      %p88 = scmp.eq.s32.totalorder %s38, 3
      %p89 = scmp.ne.s32.totalorder %s84, %s86
      %p90 = scmp.eq.s32.totalorder %s38, 0
      %p91 = por %p89, %p90
      %p92 = scmp.ne.s32.totalorder %s84, %s86
      %p93 = scmp.eq.s32.totalorder %s43, 3
      %p94 = por %p92, %p93
      %p95 = scmp.ne.s32.totalorder %s86, %s87
      %p96 = scmp.eq.s32.totalorder %s43, 0
      %p97 = por %p95, %p96
      %p98 = scmp.ne.s32.totalorder %s86, %s87
      %p99 = scmp.eq.s32.totalorder %s44, 3
      %p100 = por %p98, %p99
      %p102 = scmp.ne.s32.totalorder %s87, %s101
      %p103 = scmp.eq.s32.totalorder %s44, 0
      %p104 = por %p102, %p103
      %s106 = sadd.s32 %s105, 1
      %p109 = scmp.eq.s32.totalorder %s38, 3
      %p110 = scmp.ne.s32.totalorder %s105, %s107
      %p111 = scmp.eq.s32.totalorder %s38, 0
      %p112 = por %p110, %p111
      %p113 = scmp.ne.s32.totalorder %s105, %s107
      %p114 = scmp.eq.s32.totalorder %s43, 3
      %p115 = por %p113, %p114
      %p116 = scmp.ne.s32.totalorder %s107, %s108
      %p117 = scmp.eq.s32.totalorder %s43, 0
      %p118 = por %p116, %p117
      %p119 = scmp.ne.s32.totalorder %s107, %s108
      %p120 = scmp.eq.s32.totalorder %s44, 3
      %p121 = por %p119, %p120
      %p123 = scmp.ne.s32.totalorder %s108, %s122
      %p124 = scmp.eq.s32.totalorder %s44, 0
      %p125 = por %p123, %p124
      %s127 = sadd.s32 %s126, 1
      %p130 = scmp.eq.s32.totalorder %s38, 3
      %p131 = scmp.ne.s32.totalorder %s126, %s128
      %p132 = scmp.eq.s32.totalorder %s38, 0
      %p133 = por %p131, %p132
      %p134 = scmp.ne.s32.totalorder %s126, %s128
      %p135 = scmp.eq.s32.totalorder %s43, 3
      %p136 = por %p134, %p135
      %p137 = scmp.ne.s32.totalorder %s128, %s129
      %p138 = scmp.eq.s32.totalorder %s43, 0
      %p139 = por %p137, %p138
      %p140 = scmp.ne.s32.totalorder %s128, %s129
      %p141 = scmp.eq.s32.totalorder %s44, 3
      %p142 = por %p140, %p141
      %p144 = scmp.ne.s32.totalorder %s129, %s143
      %p145 = scmp.eq.s32.totalorder %s44, 0
      %p146 = por %p144, %p145
      %s148 = sadd.s32 %s147, 1
      %p151 = scmp.eq.s32.totalorder %s38, 3
      %p152 = scmp.ne.s32.totalorder %s147, %s149
      %p153 = scmp.eq.s32.totalorder %s38, 0
      %p154 = por %p152, %p153
      %p155 = scmp.ne.s32.totalorder %s147, %s149
      %p156 = scmp.eq.s32.totalorder %s43, 3
      %p157 = por %p155, %p156
      %p158 = scmp.ne.s32.totalorder %s149, %s150
      %p159 = scmp.eq.s32.totalorder %s43, 0
      %p160 = por %p158, %p159
      %p161 = scmp.ne.s32.totalorder %s149, %s150
      %p162 = scmp.eq.s32.totalorder %s44, 3
      %p163 = por %p161, %p162
      %p165 = scmp.ne.s32.totalorder %s150, %s164
      %p166 = scmp.eq.s32.totalorder %s44, 0
      %p167 = por %p165, %p166
      %s169 = sadd.s32 %s168, 1
      %p172 = scmp.eq.s32.totalorder %s38, 3
      %p173 = scmp.ne.s32.totalorder %s168, %s170
      %p174 = scmp.eq.s32.totalorder %s38, 0
      %p175 = por %p173, %p174
      %p176 = scmp.ne.s32.totalorder %s168, %s170
      %p177 = scmp.eq.s32.totalorder %s43, 3
      %p178 = por %p176, %p177
      %p179 = scmp.ne.s32.totalorder %s170, %s171
      %p180 = scmp.eq.s32.totalorder %s43, 0
      %p181 = por %p179, %p180
      %p182 = scmp.ne.s32.totalorder %s170, %s171
      %p183 = scmp.eq.s32.totalorder %s44, 3
      %p184 = por %p182, %p183
      %p186 = scmp.ne.s32.totalorder %s171, %s185
      %p187 = scmp.eq.s32.totalorder %s44, 0
      %p188 = por %p186, %p187
      %s190 = sadd.s32 %s189, 1
      %p193 = scmp.eq.s32.totalorder %s38, 3
      %p194 = scmp.ne.s32.totalorder %s189, %s191
      %p195 = scmp.eq.s32.totalorder %s38, 0
      %p196 = por %p194, %p195
      %p197 = scmp.ne.s32.totalorder %s189, %s191
      %p198 = scmp.eq.s32.totalorder %s43, 3
      %p199 = por %p197, %p198
      %p200 = scmp.ne.s32.totalorder %s191, %s192
      %p201 = scmp.eq.s32.totalorder %s43, 0
      %p202 = por %p200, %p201
      %p203 = scmp.ne.s32.totalorder %s191, %s192
      %p204 = scmp.eq.s32.totalorder %s44, 3
      %p205 = por %p203, %p204
      %p207 = scmp.ne.s32.totalorder %s192, %s206
      %p208 = scmp.eq.s32.totalorder %s44, 0
      %p209 = por %p207, %p208
      %s211 = sadd.s32 %s210, 1
      %p214 = scmp.eq.s32.totalorder %s38, 3
      %p215 = scmp.ne.s32.totalorder %s210, %s212
      %p216 = scmp.eq.s32.totalorder %s38, 0
      %p217 = por %p215, %p216
      %p218 = scmp.ne.s32.totalorder %s210, %s212
      %p219 = scmp.eq.s32.totalorder %s43, 3
      %p220 = por %p218, %p219
      %p221 = scmp.ne.s32.totalorder %s212, %s213
      %p222 = scmp.eq.s32.totalorder %s43, 0
      %p223 = por %p221, %p222
      %p224 = scmp.ne.s32.totalorder %s212, %s213
      %p225 = scmp.eq.s32.totalorder %s44, 3
      %p226 = por %p224, %p225
      %p228 = scmp.ne.s32.totalorder %s213, %s227
      %p229 = scmp.eq.s32.totalorder %s44, 0
      %p230 = por %p228, %p229
      %s232 = sadd.s32 %s231, 1
      %p235 = scmp.eq.s32.totalorder %s38, 3
      %p236 = scmp.ne.s32.totalorder %s231, %s233
      %p237 = scmp.eq.s32.totalorder %s38, 0
      %p238 = por %p236, %p237
      %p239 = scmp.ne.s32.totalorder %s231, %s233
      %p240 = scmp.eq.s32.totalorder %s43, 3
      %p241 = por %p239, %p240
      %p242 = scmp.ne.s32.totalorder %s233, %s234
      %p243 = scmp.eq.s32.totalorder %s43, 0
      %p244 = por %p242, %p243
      %p245 = scmp.ne.s32.totalorder %s233, %s234
      %p246 = scmp.eq.s32.totalorder %s44, 3
      %p247 = por %p245, %p246
      %p249 = scmp.ne.s32.totalorder %s234, %s248
      %p250 = scmp.eq.s32.totalorder %s44, 0
      %p251 = por %p249, %p250
      %s253 = sadd.s32 %s252, 1
      %p256 = scmp.eq.s32.totalorder %s38, 3
      %p257 = scmp.ne.s32.totalorder %s252, %s254
      %p258 = scmp.eq.s32.totalorder %s38, 0
      %p259 = por %p257, %p258
      %p260 = scmp.ne.s32.totalorder %s252, %s254
      %p261 = scmp.eq.s32.totalorder %s43, 3
      %p262 = por %p260, %p261
      %p263 = scmp.ne.s32.totalorder %s254, %s255
      %p264 = scmp.eq.s32.totalorder %s43, 0
      %p265 = por %p263, %p264
      %p266 = scmp.ne.s32.totalorder %s254, %s255
      %p267 = scmp.eq.s32.totalorder %s44, 3
      %p268 = por %p266, %p267
      %p270 = scmp.ne.s32.totalorder %s255, %s269
      %p271 = scmp.eq.s32.totalorder %s44, 0
      %p272 = por %p270, %p271
      %s274 = sadd.s32 %s273, 1
      %p277 = scmp.eq.s32.totalorder %s38, 3
      %p278 = scmp.ne.s32.totalorder %s273, %s275
      %p279 = scmp.eq.s32.totalorder %s38, 0
      %p280 = por %p278, %p279
      %p281 = scmp.ne.s32.totalorder %s273, %s275
      %p282 = scmp.eq.s32.totalorder %s43, 3
      %p283 = por %p281, %p282
      %p284 = scmp.ne.s32.totalorder %s275, %s276
      %p285 = scmp.eq.s32.totalorder %s43, 0
      %p286 = por %p284, %p285
      %p287 = scmp.ne.s32.totalorder %s275, %s276
      %p288 = scmp.eq.s32.totalorder %s44, 3
      %p289 = por %p287, %p288
      %p291 = scmp.ne.s32.totalorder %s276, %s290
      %p292 = scmp.eq.s32.totalorder %s44, 0
      %p293 = por %p291, %p292
      %s295 = sadd.s32 %s294, 1
      %p298 = scmp.eq.s32.totalorder %s38, 3
      %p299 = scmp.ne.s32.totalorder %s294, %s296
      %p300 = scmp.eq.s32.totalorder %s38, 0
      %p301 = por %p299, %p300
      %p302 = scmp.ne.s32.totalorder %s294, %s296
      %p303 = scmp.eq.s32.totalorder %s43, 3
      %p304 = por %p302, %p303
      %p305 = scmp.ne.s32.totalorder %s296, %s297
      %p306 = scmp.eq.s32.totalorder %s43, 0
      %p307 = por %p305, %p306
      %p308 = scmp.ne.s32.totalorder %s296, %s297
      %p309 = scmp.eq.s32.totalorder %s44, 3
      %p310 = por %p308, %p309
      %p312 = scmp.ne.s32.totalorder %s297, %s311
      %p313 = scmp.eq.s32.totalorder %s44, 0
      %p314 = por %p312, %p313
      %s316 = sadd.s32 %s315, 1
      %p319 = scmp.eq.s32.totalorder %s38, 3
      %p320 = scmp.ne.s32.totalorder %s315, %s317
      %p321 = scmp.eq.s32.totalorder %s38, 0
      %p322 = por %p320, %p321
      %p323 = scmp.ne.s32.totalorder %s315, %s317
      %p324 = scmp.eq.s32.totalorder %s43, 3
      %p325 = por %p323, %p324
      %p326 = scmp.ne.s32.totalorder %s317, %s318
      %p327 = scmp.eq.s32.totalorder %s43, 0
      %p328 = por %p326, %p327
      %p329 = scmp.ne.s32.totalorder %s317, %s318
      %p330 = scmp.eq.s32.totalorder %s44, 3
      %p331 = por %p329, %p330
      %p333 = scmp.ne.s32.totalorder %s318, %s332
      %p334 = scmp.eq.s32.totalorder %s44, 0
      %p335 = por %p333, %p334
      %s337 = sadd.s32 %s336, 1
      %p340 = scmp.eq.s32.totalorder %s38, 3
      %p341 = scmp.ne.s32.totalorder %s336, %s338
      %p342 = scmp.eq.s32.totalorder %s38, 0
      %p343 = por %p341, %p342
      %p344 = scmp.ne.s32.totalorder %s336, %s338
      %p345 = scmp.eq.s32.totalorder %s43, 3
      %p346 = por %p344, %p345
      %p347 = scmp.ne.s32.totalorder %s338, %s339
      %p348 = scmp.eq.s32.totalorder %s43, 0
      %p349 = por %p347, %p348
      %p350 = scmp.ne.s32.totalorder %s338, %s339
      %p351 = scmp.eq.s32.totalorder %s44, 3
      %p352 = por %p350, %p351
      %p354 = scmp.ne.s32.totalorder %s339, %s353
      %p355 = scmp.eq.s32.totalorder %s44, 0
      %p356 = por %p354, %p355
      %s358 = sadd.s32 %s357, 1
      %p361 = scmp.eq.s32.totalorder %s38, 3
      %p362 = scmp.ne.s32.totalorder %s357, %s359
      %p363 = scmp.eq.s32.totalorder %s38, 0
      %p364 = por %p362, %p363
      %p365 = scmp.ne.s32.totalorder %s357, %s359
      %p366 = scmp.eq.s32.totalorder %s43, 3
      %p367 = por %p365, %p366
      %p368 = scmp.ne.s32.totalorder %s359, %s360
      %p369 = scmp.eq.s32.totalorder %s43, 0
      %p370 = por %p368, %p369
      %p371 = scmp.ne.s32.totalorder %s359, %s360
      %p372 = scmp.eq.s32.totalorder %s44, 3
      %p373 = por %p371, %p372
      %p375 = scmp.ne.s32.totalorder %s360, %s374
      %p376 = scmp.eq.s32.totalorder %s44, 0
      %p377 = por %p375, %p376
      %s379 = sadd.s32 %s378, 1
      %p382 = scmp.eq.s32.totalorder %s38, 3
      %p383 = scmp.ne.s32.totalorder %s378, %s380
      %p384 = scmp.eq.s32.totalorder %s38, 0
      %p385 = por %p383, %p384
      %p386 = scmp.ne.s32.totalorder %s378, %s380
      %p387 = scmp.eq.s32.totalorder %s43, 3
      %p388 = por %p386, %p387
      %p389 = scmp.ne.s32.totalorder %s380, %s381
      %p390 = scmp.eq.s32.totalorder %s43, 0
      %p391 = por %p389, %p390
      %p392 = scmp.ne.s32.totalorder %s380, %s381
      %p393 = scmp.eq.s32.totalorder %s44, 3
      %p394 = por %p392, %p393
      %p396 = scmp.ne.s32.totalorder %s381, %s395
      %p397 = scmp.eq.s32.totalorder %s44, 0
      %p398 = por %p396, %p397
      %s400 = sadd.s32 %s399, 1
      %p403 = scmp.eq.s32.totalorder %s38, 3
      %p404 = scmp.ne.s32.totalorder %s399, %s401
      %p405 = scmp.eq.s32.totalorder %s38, 0
      %p406 = por %p404, %p405
      %p407 = scmp.ne.s32.totalorder %s399, %s401
      %p408 = scmp.eq.s32.totalorder %s43, 3
      %p409 = por %p407, %p408
      %p410 = scmp.ne.s32.totalorder %s401, %s402
      %p411 = scmp.eq.s32.totalorder %s43, 0
      %p412 = por %p410, %p411
      %p413 = scmp.ne.s32.totalorder %s401, %s402
      %p414 = scmp.eq.s32.totalorder %s44, 3
      %p415 = por %p413, %p414
      %p417 = scmp.ne.s32.totalorder %s402, %s416
      %p418 = scmp.eq.s32.totalorder %s44, 0
      %p419 = por %p417, %p418
      %s421 = sadd.s32 %s420, 1
      %p424 = scmp.eq.s32.totalorder %s38, 3
      %p425 = scmp.ne.s32.totalorder %s420, %s422
      %p426 = scmp.eq.s32.totalorder %s38, 0
      %p427 = por %p425, %p426
      %p428 = scmp.ne.s32.totalorder %s420, %s422
      %p429 = scmp.eq.s32.totalorder %s43, 3
      %p430 = por %p428, %p429
      %p431 = scmp.ne.s32.totalorder %s422, %s423
      %p432 = scmp.eq.s32.totalorder %s43, 0
      %p433 = por %p431, %p432
      %p434 = scmp.ne.s32.totalorder %s422, %s423
      %p435 = scmp.eq.s32.totalorder %s44, 3
      %p436 = por %p434, %p435
      %p438 = scmp.ne.s32.totalorder %s423, %s437
      %p439 = scmp.eq.s32.totalorder %s44, 0
      %p440 = por %p438, %p439
      %s442 = sadd.s32 %s441, 1
      %p445 = scmp.eq.s32.totalorder %s38, 3
      %p446 = scmp.ne.s32.totalorder %s441, %s443
      %p447 = scmp.eq.s32.totalorder %s38, 0
      %p448 = por %p446, %p447
      %p449 = scmp.ne.s32.totalorder %s441, %s443
      %p450 = scmp.eq.s32.totalorder %s43, 3
      %p451 = por %p449, %p450
      %p452 = scmp.ne.s32.totalorder %s443, %s444
      %p453 = scmp.eq.s32.totalorder %s43, 0
      %p454 = por %p452, %p453
      %p455 = scmp.ne.s32.totalorder %s443, %s444
      %p456 = scmp.eq.s32.totalorder %s44, 3
      %p457 = por %p455, %p456
      %p459 = scmp.ne.s32.totalorder %s444, %s458
      %p460 = scmp.eq.s32.totalorder %s44, 0
      %p461 = por %p459, %p460
      %s463 = sadd.s32 %s462, 1
      %p466 = scmp.eq.s32.totalorder %s38, 3
      %p467 = scmp.ne.s32.totalorder %s462, %s464
      %p468 = scmp.eq.s32.totalorder %s38, 0
      %p469 = por %p467, %p468
      %p470 = scmp.ne.s32.totalorder %s462, %s464
      %p471 = scmp.eq.s32.totalorder %s43, 3
      %p472 = por %p470, %p471
      %p473 = scmp.ne.s32.totalorder %s464, %s465
      %p474 = scmp.eq.s32.totalorder %s43, 0
      %p475 = por %p473, %p474
      %p476 = scmp.ne.s32.totalorder %s464, %s465
      %p477 = scmp.eq.s32.totalorder %s44, 3
      %p478 = por %p476, %p477
      %p480 = scmp.ne.s32.totalorder %s465, %s479
      %p481 = scmp.eq.s32.totalorder %s44, 0
      %p482 = por %p480, %p481
      %s484 = sadd.s32 %s483, 1
      %p487 = scmp.eq.s32.totalorder %s38, 3
      %p488 = scmp.ne.s32.totalorder %s483, %s485
      %p489 = scmp.eq.s32.totalorder %s38, 0
      %p490 = por %p488, %p489
      %p491 = scmp.ne.s32.totalorder %s483, %s485
      %p492 = scmp.eq.s32.totalorder %s43, 3
      %p493 = por %p491, %p492
      %p494 = scmp.ne.s32.totalorder %s485, %s486
      %p495 = scmp.eq.s32.totalorder %s43, 0
      %p496 = por %p494, %p495
      %p497 = scmp.ne.s32.totalorder %s485, %s486
      %p498 = scmp.eq.s32.totalorder %s44, 3
      %p499 = por %p497, %p498
      %p501 = scmp.ne.s32.totalorder %s486, %s500
      %p502 = scmp.eq.s32.totalorder %s44, 0
      %p503 = por %p501, %p502
      %s504 = ssub.s32 %s45, %s57
      %s505 = ssub.s32 %s46, %s53
      %s506 = sor.u32 %s504, %s505
      %p507 = scmp.eq.s32.totalorder %s506, 0
      %s509 = sadd.s32 %s508, 1
      %s510 = scalar_select %p507, %s508, %s509
      %p513 = pneg %p507
      %p514 = scmp.eq.s32.totalorder %s38, 3
      %p515 = por %p513, %p514
      %p516 = scmp.ne.s32.totalorder %s508, %s511
      %p517 = scmp.eq.s32.totalorder %s38, 0
      %p518 = por %p516, %p517
      %p519 = scmp.ne.s32.totalorder %s508, %s511
      %p520 = scmp.eq.s32.totalorder %s43, 3
      %p521 = por %p519, %p520
      %p522 = scmp.ne.s32.totalorder %s511, %s512
      %p523 = scmp.eq.s32.totalorder %s43, 0
      %p524 = por %p522, %p523
      %p525 = scmp.ne.s32.totalorder %s511, %s512
      %p526 = scmp.eq.s32.totalorder %s44, 3
      %p527 = por %p525, %p526
      %p529 = scmp.ne.s32.totalorder %s512, %s528
      %p530 = scmp.eq.s32.totalorder %s44, 0
      %p531 = por %p529, %p530
      %p532 = scmp.le.s32.totalorder 1, %s38
      %p533 = scmp.lt.s32.totalorder %s38, 5
      %p534 = pnand %p532, %p533
      %p535 = pneg %p534
      // Predicated region
      $region9: #{tpu_custom_call.1} parent=5 // pred_check
        _
      $region10: #{tpu_custom_call.1} parent=5 // pred_check_branch
        %537 = sbr.rel (%p534) target = $region12
      $region11: #{tpu_custom_call.1} parent=5 // pred_region
        %s538 = ssub.s32 %s38, 1
        // Predicated region
        $region13: #{tpu_custom_call.1} parent=11 // pred_check
          %p539 = pneg %p97
        $region14: #{tpu_custom_call.1} parent=11 // pred_check_branch
          %541 = sbr.rel (%p539) target = $region16
        $region15: #{tpu_custom_call.1} parent=11 // pred_region
          %543 = vsyncadd [#allocation6], 0
          %s545 = sshll.u32 %s1, 4
          %s546 = int_to_ptr.hbm [resolvable:$true] %s545
          %s547 = sshll.u32 [#allocation5], 4
          %s548 = int_to_ptr.vmem [resolvable:$true] %s547
          %550 = dma.hbm_to_vmem [thread:$0]  %s546, 16, %s548, [#allocation6]
        $region16: #{tpu_custom_call.1} parent=11 // pred_fallthru
          _
        // Predicated region
        $region17: #{tpu_custom_call.1} parent=11 // pred_check
          %p551 = pneg %p118
        $region18: #{tpu_custom_call.1} parent=11 // pred_check_branch
          %553 = sbr.rel (%p551) target = $region20
        $region19: #{tpu_custom_call.1} parent=11 // pred_region
          %555 = vsyncadd [#allocation9], 0
          %s557 = sshll.u32 %s2, 4
          %s558 = int_to_ptr.hbm [resolvable:$true] %s557
          %s559 = sshll.u32 [#allocation8], 4
          %s560 = int_to_ptr.vmem [resolvable:$true] %s559
          %562 = dma.hbm_to_vmem [thread:$0]  %s558, 16, %s560, [#allocation9]
        $region20: #{tpu_custom_call.1} parent=11 // pred_fallthru
          _
        // Predicated region
        $region21: #{tpu_custom_call.1} parent=11 // pred_check
          %p563 = pneg %p139
        $region22: #{tpu_custom_call.1} parent=11 // pred_check_branch
          %565 = sbr.rel (%p563) target = $region24
        $region23: #{tpu_custom_call.1} parent=11 // pred_region
          _
        $region24: #{tpu_custom_call.1} parent=11 // pred_fallthru
          _
        // Predicated region
        $region25: #{tpu_custom_call.1} parent=11 // pred_check
          %p566 = pneg %p160
        $region26: #{tpu_custom_call.1} parent=11 // pred_check_branch
          %568 = sbr.rel (%p566) target = $region28
        $region27: #{tpu_custom_call.1} parent=11 // pred_region
          %570 = vsyncadd [#allocation9], 0
          %s572 = sshll.u32 %s4, 4
          %s573 = int_to_ptr.hbm [resolvable:$true] %s572
          %s574 = sshll.u32 [#allocation10], 4
          %s575 = int_to_ptr.vmem [resolvable:$true] %s574
          %577 = dma.hbm_to_vmem [thread:$0]  %s573, 16, %s575, [#allocation9]
        $region28: #{tpu_custom_call.1} parent=11 // pred_fallthru
          _
        // Predicated region
        $region29: #{tpu_custom_call.1} parent=11 // pred_check
          %p578 = pneg %p181
        $region30: #{tpu_custom_call.1} parent=11 // pred_check_branch
          %580 = sbr.rel (%p578) target = $region32
        $region31: #{tpu_custom_call.1} parent=11 // pred_region
          %582 = vsyncadd [#allocation12], 0
          %s583 = sshll.u32 %s5, 4
          %s584 = int_to_ptr.hbm [resolvable:$true] %s583
          %s585 = sshll.u32 [#allocation11], 4
          %s586 = int_to_ptr.vmem [resolvable:$true] %s585
          %591 = dma.hbm_to_vmem [thread:$0]  %s584, 256, %s586, [#allocation12], 64, 64, 4
        $region32: #{tpu_custom_call.1} parent=11 // pred_fallthru
          _
        // Predicated region
        $region33: #{tpu_custom_call.1} parent=11 // pred_check
          %p592 = pneg %p202
        $region34: #{tpu_custom_call.1} parent=11 // pred_check_branch
          %594 = sbr.rel (%p592) target = $region36
        $region35: #{tpu_custom_call.1} parent=11 // pred_region
          %596 = vsyncadd [#allocation12], 0
          %s598 = sshll.u32 %s6, 4
          %s599 = int_to_ptr.hbm [resolvable:$true] %s598
          %s600 = sshll.u32 [#allocation13], 4
          %s601 = int_to_ptr.vmem [resolvable:$true] %s600
          %603 = dma.hbm_to_vmem [thread:$0]  %s599, 16, %s601, [#allocation12]
        $region36: #{tpu_custom_call.1} parent=11 // pred_fallthru
          _
        // Predicated region
        $region37: #{tpu_custom_call.1} parent=11 // pred_check
          %p604 = pneg %p223
        $region38: #{tpu_custom_call.1} parent=11 // pred_check_branch
          %606 = sbr.rel (%p604) target = $region40
        $region39: #{tpu_custom_call.1} parent=11 // pred_region
          %608 = vsyncadd [#allocation15], 0
          %s609 = sshll.u32 %s7, 4
          %s610 = int_to_ptr.hbm [resolvable:$true] %s609
          %s611 = sshll.u32 [#allocation14], 4
          %s612 = int_to_ptr.vmem [resolvable:$true] %s611
          %617 = dma.hbm_to_vmem [thread:$0]  %s610, 256, %s612, [#allocation15], 64, 64, 4
        $region40: #{tpu_custom_call.1} parent=11 // pred_fallthru
          _
        // Predicated region
        $region41: #{tpu_custom_call.1} parent=11 // pred_check
          %p618 = pneg %p244
        $region42: #{tpu_custom_call.1} parent=11 // pred_check_branch
          %620 = sbr.rel (%p618) target = $region44
        $region43: #{tpu_custom_call.1} parent=11 // pred_region
          %622 = vsyncadd [#allocation15], 0
          %s624 = sshll.u32 %s8, 4
          %s625 = int_to_ptr.hbm [resolvable:$true] %s624
          %s626 = sshll.u32 [#allocation16], 4
          %s627 = int_to_ptr.vmem [resolvable:$true] %s626
          %629 = dma.hbm_to_vmem [thread:$0]  %s625, 16, %s627, [#allocation15]
        $region44: #{tpu_custom_call.1} parent=11 // pred_fallthru
          _
        // Predicated region
        $region45: #{tpu_custom_call.1} parent=11 // pred_check
          %p630 = pneg %p265
        $region46: #{tpu_custom_call.1} parent=11 // pred_check_branch
          %632 = sbr.rel (%p630) target = $region48
        $region47: #{tpu_custom_call.1} parent=11 // pred_region
          %634 = vsyncadd [#allocation18], 0
          %s635 = sshll.u32 %s9, 4
          %s636 = int_to_ptr.hbm [resolvable:$true] %s635
          %s637 = sshll.u32 [#allocation17], 4
          %s638 = int_to_ptr.vmem [resolvable:$true] %s637
          %643 = dma.hbm_to_vmem [thread:$0]  %s636, 256, %s638, [#allocation18], 64, 64, 4
        $region48: #{tpu_custom_call.1} parent=11 // pred_fallthru
          _
        // Predicated region
        $region49: #{tpu_custom_call.1} parent=11 // pred_check
          %p644 = pneg %p286
        $region50: #{tpu_custom_call.1} parent=11 // pred_check_branch
          %646 = sbr.rel (%p644) target = $region52
        $region51: #{tpu_custom_call.1} parent=11 // pred_region
          %648 = vsyncadd [#allocation18], 0
          %s650 = sshll.u32 %s10, 4
          %s651 = int_to_ptr.hbm [resolvable:$true] %s650
          %s652 = sshll.u32 [#allocation19], 4
          %s653 = int_to_ptr.vmem [resolvable:$true] %s652
          %655 = dma.hbm_to_vmem [thread:$0]  %s651, 16, %s653, [#allocation18]
        $region52: #{tpu_custom_call.1} parent=11 // pred_fallthru
          _
        // Predicated region
        $region53: #{tpu_custom_call.1} parent=11 // pred_check
          %p656 = pneg %p307
        $region54: #{tpu_custom_call.1} parent=11 // pred_check_branch
          %658 = sbr.rel (%p656) target = $region56
        $region55: #{tpu_custom_call.1} parent=11 // pred_region
          %660 = vsyncadd [#allocation21], 0
          %s662 = sshll.u32 %s11, 4
          %s663 = int_to_ptr.hbm [resolvable:$true] %s662
          %s664 = sshll.u32 [#allocation20], 4
          %s665 = int_to_ptr.vmem [resolvable:$true] %s664
          %667 = dma.hbm_to_vmem [thread:$0]  %s663, 16, %s665, [#allocation21]
        $region56: #{tpu_custom_call.1} parent=11 // pred_fallthru
          _
        // Predicated region
        $region57: #{tpu_custom_call.1} parent=11 // pred_check
          %p668 = pneg %p328
        $region58: #{tpu_custom_call.1} parent=11 // pred_check_branch
          %670 = sbr.rel (%p668) target = $region60
        $region59: #{tpu_custom_call.1} parent=11 // pred_region
          %672 = vsyncadd [#allocation21], 0
          %s674 = sshll.u32 %s12, 4
          %s675 = int_to_ptr.hbm [resolvable:$true] %s674
          %s676 = sshll.u32 [#allocation22], 4
          %s677 = int_to_ptr.vmem [resolvable:$true] %s676
          %679 = dma.hbm_to_vmem [thread:$0]  %s675, 16, %s677, [#allocation21]
        $region60: #{tpu_custom_call.1} parent=11 // pred_fallthru
          _
        // Predicated region
        $region61: #{tpu_custom_call.1} parent=11 // pred_check
          %p680 = pneg %p349
        $region62: #{tpu_custom_call.1} parent=11 // pred_check_branch
          %682 = sbr.rel (%p680) target = $region64
        $region63: #{tpu_custom_call.1} parent=11 // pred_region
          %684 = vsyncadd [#allocation24], 0
          %s685 = sshll.u32 %s13, 4
          %s686 = int_to_ptr.hbm [resolvable:$true] %s685
          %s687 = sshll.u32 [#allocation23], 4
          %s688 = int_to_ptr.vmem [resolvable:$true] %s687
          %693 = dma.hbm_to_vmem [thread:$0]  %s686, 256, %s688, [#allocation24], 64, 64, 4
        $region64: #{tpu_custom_call.1} parent=11 // pred_fallthru
          _
        // Predicated region
        $region65: #{tpu_custom_call.1} parent=11 // pred_check
          %p694 = pneg %p370
        $region66: #{tpu_custom_call.1} parent=11 // pred_check_branch
          %696 = sbr.rel (%p694) target = $region68
        $region67: #{tpu_custom_call.1} parent=11 // pred_region
          %698 = vsyncadd [#allocation24], 0
          %s700 = sshll.u32 %s14, 4
          %s701 = int_to_ptr.hbm [resolvable:$true] %s700
          %s702 = sshll.u32 [#allocation25], 4
          %s703 = int_to_ptr.vmem [resolvable:$true] %s702
          %705 = dma.hbm_to_vmem [thread:$0]  %s701, 16, %s703, [#allocation24]
        $region68: #{tpu_custom_call.1} parent=11 // pred_fallthru
          _
        // Predicated region
        $region69: #{tpu_custom_call.1} parent=11 // pred_check
          %p706 = pneg %p391
        $region70: #{tpu_custom_call.1} parent=11 // pred_check_branch
          %708 = sbr.rel (%p706) target = $region72
        $region71: #{tpu_custom_call.1} parent=11 // pred_region
          _
        $region72: #{tpu_custom_call.1} parent=11 // pred_fallthru
          _
        // Predicated region
        $region73: #{tpu_custom_call.1} parent=11 // pred_check
          %p709 = pneg %p412
        $region74: #{tpu_custom_call.1} parent=11 // pred_check_branch
          %711 = sbr.rel (%p709) target = $region76
        $region75: #{tpu_custom_call.1} parent=11 // pred_region
          %713 = vsyncadd [#allocation27], 0
          %s715 = sshll.u32 %s16, 4
          %s716 = int_to_ptr.hbm [resolvable:$true] %s715
          %s717 = sshll.u32 [#allocation26], 4
          %s718 = int_to_ptr.vmem [resolvable:$true] %s717
          %720 = dma.hbm_to_vmem [thread:$0]  %s716, 16, %s718, [#allocation27]
        $region76: #{tpu_custom_call.1} parent=11 // pred_fallthru
          _
        // Predicated region
        $region77: #{tpu_custom_call.1} parent=11 // pred_check
          %p721 = pneg %p433
        $region78: #{tpu_custom_call.1} parent=11 // pred_check_branch
          %723 = sbr.rel (%p721) target = $region80
        $region79: #{tpu_custom_call.1} parent=11 // pred_region
          _
        $region80: #{tpu_custom_call.1} parent=11 // pred_fallthru
          _
        // Predicated region
        $region81: #{tpu_custom_call.1} parent=11 // pred_check
          %p724 = pneg %p454
        $region82: #{tpu_custom_call.1} parent=11 // pred_check_branch
          %726 = sbr.rel (%p724) target = $region84
        $region83: #{tpu_custom_call.1} parent=11 // pred_region
          _
        $region84: #{tpu_custom_call.1} parent=11 // pred_fallthru
          _
        // Predicated region
        $region85: #{tpu_custom_call.1} parent=11 // pred_check
          %p727 = pneg %p475
        $region86: #{tpu_custom_call.1} parent=11 // pred_check_branch
          %729 = sbr.rel (%p727) target = $region88
        $region87: #{tpu_custom_call.1} parent=11 // pred_region
          _
        $region88: #{tpu_custom_call.1} parent=11 // pred_fallthru
          _
        // Predicated region
        $region89: #{tpu_custom_call.1} parent=11 // pred_check
          %p730 = pneg %p496
        $region90: #{tpu_custom_call.1} parent=11 // pred_check_branch
          %732 = sbr.rel (%p730) target = $region92
        $region91: #{tpu_custom_call.1} parent=11 // pred_region
          _
        $region92: #{tpu_custom_call.1} parent=11 // pred_fallthru
          _
      $region12: #{tpu_custom_call.1} parent=5 // pred_fallthru
        _
      %p733 = scmp.lt.s32.totalorder %s38, 4
      // Predicated region
      $region93: #{tpu_custom_call.1} parent=5 // pred_check
        %p734 = pneg %p733
      $region94: #{tpu_custom_call.1} parent=5 // pred_check_branch
        %736 = sbr.rel (%p734) target = $region96
      $region95: #{tpu_custom_call.1} parent=5 // pred_region
        // Predicated region
        $region97: #{tpu_custom_call.1} parent=95 // pred_check
          %p737 = pneg %p70
        $region98: #{tpu_custom_call.1} parent=95 // pred_check_branch
          %739 = sbr.rel (%p737) target = $region100
        $region99: #{tpu_custom_call.1} parent=95 // pred_region
          %p740 = scmp.lt.s32.totalorder %s45, 1
          %s741 = scalar_select %p740, %s45, 1
          %s742 = smul.addr %s741, 2
          %s743 = smul.addr %s742, 8
          %s744 = scalar_lea.vmem %s0, %s743
        $region100: #{tpu_custom_call.1} parent=95 // pred_fallthru
          _
      $region96: #{tpu_custom_call.1} parent=5 // pred_fallthru
        _
      %p745 = scmp.le.s32.totalorder 1, %s38
      %p746 = scmp.lt.s32.totalorder %s38, 5
      %p747 = pnand %p745, %p746
      %p748 = pneg %p747
      // Predicated region
      $region101: #{tpu_custom_call.1} parent=5 // pred_check
        _
      $region102: #{tpu_custom_call.1} parent=5 // pred_check_branch
        %750 = sbr.rel (%p747) target = $region104
      $region103: #{tpu_custom_call.1} parent=5 // pred_region
        %s751 = ssub.s32 %s38, 1
        // Predicated region
        $region105: #{tpu_custom_call.1} parent=103 // pred_check
          %p752 = pneg %p97
        $region106: #{tpu_custom_call.1} parent=103 // pred_check_branch
          %754 = sbr.rel (%p752) target = $region108
        $region107: #{tpu_custom_call.1} parent=103 // pred_region
          %756 = dma.done [#allocation6], 16
        $region108: #{tpu_custom_call.1} parent=103 // pred_fallthru
          _
        // Predicated region
        $region109: #{tpu_custom_call.1} parent=103 // pred_check
          %p757 = pneg %p118
        $region110: #{tpu_custom_call.1} parent=103 // pred_check_branch
          %759 = sbr.rel (%p757) target = $region112
        $region111: #{tpu_custom_call.1} parent=103 // pred_region
          %761 = dma.done [#allocation9], 16
        $region112: #{tpu_custom_call.1} parent=103 // pred_fallthru
          _
        // Predicated region
        $region113: #{tpu_custom_call.1} parent=103 // pred_check
          %p762 = pneg %p160
        $region114: #{tpu_custom_call.1} parent=103 // pred_check_branch
          %764 = sbr.rel (%p762) target = $region116
        $region115: #{tpu_custom_call.1} parent=103 // pred_region
          %766 = dma.done [#allocation9], 16
        $region116: #{tpu_custom_call.1} parent=103 // pred_fallthru
          _
        // Predicated region
        $region117: #{tpu_custom_call.1} parent=103 // pred_check
          %p767 = pneg %p181
        $region118: #{tpu_custom_call.1} parent=103 // pred_check_branch
          %769 = sbr.rel (%p767) target = $region120
        $region119: #{tpu_custom_call.1} parent=103 // pred_region
          %771 = dma.done [#allocation12], 256
        $region120: #{tpu_custom_call.1} parent=103 // pred_fallthru
          _
        // Predicated region
        $region121: #{tpu_custom_call.1} parent=103 // pred_check
          %p772 = pneg %p202
        $region122: #{tpu_custom_call.1} parent=103 // pred_check_branch
          %774 = sbr.rel (%p772) target = $region124
        $region123: #{tpu_custom_call.1} parent=103 // pred_region
          %776 = dma.done [#allocation12], 16
        $region124: #{tpu_custom_call.1} parent=103 // pred_fallthru
          _
        // Predicated region
        $region125: #{tpu_custom_call.1} parent=103 // pred_check
          %p777 = pneg %p223
        $region126: #{tpu_custom_call.1} parent=103 // pred_check_branch
          %779 = sbr.rel (%p777) target = $region128
        $region127: #{tpu_custom_call.1} parent=103 // pred_region
          %781 = dma.done [#allocation15], 256
        $region128: #{tpu_custom_call.1} parent=103 // pred_fallthru
          _
        // Predicated region
        $region129: #{tpu_custom_call.1} parent=103 // pred_check
          %p782 = pneg %p244
        $region130: #{tpu_custom_call.1} parent=103 // pred_check_branch
          %784 = sbr.rel (%p782) target = $region132
        $region131: #{tpu_custom_call.1} parent=103 // pred_region
          %786 = dma.done [#allocation15], 16
        $region132: #{tpu_custom_call.1} parent=103 // pred_fallthru
          _
        // Predicated region
        $region133: #{tpu_custom_call.1} parent=103 // pred_check
          %p787 = pneg %p265
        $region134: #{tpu_custom_call.1} parent=103 // pred_check_branch
          %789 = sbr.rel (%p787) target = $region136
        $region135: #{tpu_custom_call.1} parent=103 // pred_region
          %791 = dma.done [#allocation18], 256
        $region136: #{tpu_custom_call.1} parent=103 // pred_fallthru
          _
        // Predicated region
        $region137: #{tpu_custom_call.1} parent=103 // pred_check
          %p792 = pneg %p286
        $region138: #{tpu_custom_call.1} parent=103 // pred_check_branch
          %794 = sbr.rel (%p792) target = $region140
        $region139: #{tpu_custom_call.1} parent=103 // pred_region
          %796 = dma.done [#allocation18], 16
        $region140: #{tpu_custom_call.1} parent=103 // pred_fallthru
          _
        // Predicated region
        $region141: #{tpu_custom_call.1} parent=103 // pred_check
          %p797 = pneg %p307
        $region142: #{tpu_custom_call.1} parent=103 // pred_check_branch
          %799 = sbr.rel (%p797) target = $region144
        $region143: #{tpu_custom_call.1} parent=103 // pred_region
          %801 = dma.done [#allocation21], 16
        $region144: #{tpu_custom_call.1} parent=103 // pred_fallthru
          _
        // Predicated region
        $region145: #{tpu_custom_call.1} parent=103 // pred_check
          %p802 = pneg %p328
        $region146: #{tpu_custom_call.1} parent=103 // pred_check_branch
          %804 = sbr.rel (%p802) target = $region148
        $region147: #{tpu_custom_call.1} parent=103 // pred_region
          %806 = dma.done [#allocation21], 16
        $region148: #{tpu_custom_call.1} parent=103 // pred_fallthru
          _
        // Predicated region
        $region149: #{tpu_custom_call.1} parent=103 // pred_check
          %p807 = pneg %p349
        $region150: #{tpu_custom_call.1} parent=103 // pred_check_branch
          %809 = sbr.rel (%p807) target = $region152
        $region151: #{tpu_custom_call.1} parent=103 // pred_region
          %811 = dma.done [#allocation24], 256
        $region152: #{tpu_custom_call.1} parent=103 // pred_fallthru
          _
        // Predicated region
        $region153: #{tpu_custom_call.1} parent=103 // pred_check
          %p812 = pneg %p370
        $region154: #{tpu_custom_call.1} parent=103 // pred_check_branch
          %814 = sbr.rel (%p812) target = $region156
        $region155: #{tpu_custom_call.1} parent=103 // pred_region
          %816 = dma.done [#allocation24], 16
        $region156: #{tpu_custom_call.1} parent=103 // pred_fallthru
          _
        // Predicated region
        $region157: #{tpu_custom_call.1} parent=103 // pred_check
          %p817 = pneg %p412
        $region158: #{tpu_custom_call.1} parent=103 // pred_check_branch
          %819 = sbr.rel (%p817) target = $region160
        $region159: #{tpu_custom_call.1} parent=103 // pred_region
          %821 = dma.done [#allocation27], 16
        $region160: #{tpu_custom_call.1} parent=103 // pred_fallthru
          _
        %p822 = scmp.lt.s32.totalorder %s47, 1
        %s823 = scalar_select %p822, %s47, 1
        %s824 = smul.addr %s823, 2
        %s825 = smul.addr %s824, 8
        %s826 = scalar_lea.vmem %s0, %s825
        %p827 = pneg %p76
        %p828 = pneg %p73
        %p829 = pneg %p97
        %p830 = pneg %p94
        %p831 = pneg %p118
        %p832 = pneg %p115
        %p833 = pneg %p139
        %p834 = pneg %p136
        %p835 = pneg %p160
        %p836 = pneg %p157
        %p837 = pneg %p181
        %p838 = pneg %p178
        %p839 = pneg %p202
        %p840 = pneg %p199
        %p841 = pneg %p223
        %p842 = pneg %p220
        %p843 = pneg %p244
        %p844 = pneg %p241
        %p845 = pneg %p265
        %p846 = pneg %p262
        %p847 = pneg %p286
        %p848 = pneg %p283
        %p849 = pneg %p307
        %p850 = pneg %p304
        %p851 = pneg %p328
        %p852 = pneg %p325
        %p853 = pneg %p349
        %p854 = pneg %p346
        %p855 = pneg %p370
        %p856 = pneg %p367
        %p857 = pneg %p391
        %p858 = pneg %p388
        %p859 = pneg %p412
        %p860 = pneg %p409
        %p861 = pneg %p433
        %p862 = pneg %p430
        %p863 = pneg %p454
        %p864 = pneg %p451
        %p865 = pneg %p475
        %p866 = pneg %p472
        %p867 = pneg %p496
        %p868 = pneg %p493
        %p869 = pneg %p524
        %p870 = pneg %p521
        %s871 = sand.u32 %s511, 1
        %s872 = scalar_lea.sflag [#allocation7], %s871
        %s873 = sand.u32 %s511, 1
        %s874 = smul.addr %s873, 8
        %s875 = scalar_lea.vmem [#allocation28], %s874
        %p876 = scmp.lt.s32.totalorder %s47, 1
        %s877 = scalar_select %p876, %s47, 1
        %s878 = smul.addr %s877, 2
        %s879 = smul.addr %s878, 8
        %s880 = scalar_lea.vmem %s0, %s879
        %p882 = scmp.eq.s32.totalorder %s48, 0
        // Predicated region
        $region161: #{tpu_custom_call.1} parent=103 // pred_check
          %p883 = pneg %p882
        $region162: #{tpu_custom_call.1} parent=103 // pred_check_branch
          %885 = sbr.rel (%p883) target = $region164
        $region163: #{tpu_custom_call.1} parent=103 // pred_region
          %v886 = vld [vmem:[%s880] sm:$0xff]
          %v887 = vld [vmem:[%s880 + $0x8] sm:$0xff]
          %v888 = vld [vmem:[#allocation5] sm:$0x1]
          %v889 = vld [vmem:[#allocation8] sm:$0x1]
          %vm890 = vcmask 261120
          %v891 = vsel %vm890, %v886, 0.0
          %892 = vadd.xlane.f32.xlu0 %v891
          %v893 = vpop.xlane.xlu0 %892
          %v894 = vsel %vm890, %v887, 0.0
          %895 = vadd.xlane.f32.xlu0 %v894
          %v896 = vpop.xlane.xlu0 %895
          %v897 = vrcp.pop 32.0
          %v898 = vmul.f32 32.0, %v897
          %v899 = vsub.f32 1.0, %v898
          %v900 = vmul.f32 %v897, %v899
          %v901 = vadd.f32 %v897, %v900
          %vm902 = vweird.f32 %v897
          %v903 = vsel %vm902, %v897, %v901
          %v904 = vmul.f32 %v893, %v903
          %v905 = vmul.f32 %v896, %v903
          %v906 = vsub.f32 %v886, %v904
          %v907 = vsub.f32 %v887, %v905
          %v908 = vmul.f32 %v906, %v906
          %v909 = vmul.f32 %v907, %v907
          %v910 = vsel %vm890, %v908, 0.0
          %911 = vadd.xlane.f32.xlu0 %v910
          %v912 = vpop.xlane.xlu0 %911
          %v913 = vsel %vm890, %v909, 0.0
          %914 = vadd.xlane.f32.xlu0 %v913
          %v915 = vpop.xlane.xlu0 %914
          %v916 = vmul.f32 %v912, %v903
          %v917 = vmul.f32 %v915, %v903
          %v918 = vadd.f32 %v916, 1e-05
          %v919 = vadd.f32 %v917, 1e-05
          %v920 = vrsqrt.pop %v918
          %v921 = vmul.f32 %v920, %v918
          %v922 = vmul.f32 %v921, %v920
          %v923 = vmul.f32 0.5, %v922
          %v924 = vsub.f32 1.5, %v923
          %v925 = vmul.f32 %v920, %v924
          %vm926 = vweird.f32 %v918
          %vm927 = vweird.f32 %v920
          %vm928 = vmor %vm926, %vm927
          %v929 = vsel %vm928, %v920, %v925
          %v930 = vrsqrt.pop %v919
          %v931 = vmul.f32 %v930, %v919
          %v932 = vmul.f32 %v931, %v930
          %v933 = vmul.f32 0.5, %v932
          %v934 = vsub.f32 1.5, %v933
          %v935 = vmul.f32 %v930, %v934
          %vm936 = vweird.f32 %v919
          %vm937 = vweird.f32 %v930
          %vm938 = vmor %vm936, %vm937
          %v939 = vsel %vm938, %v930, %v935
          %v940 = vmul.f32 %v906, %v929
          %v941 = vmul.f32 %v907, %v939
          %v943 = vperm.slane %v888, 0
          %v945 = vmul.f32 %v940, %v943
          %v946 = vmul.f32 %v941, %v943
          %v948 = vperm.slane %v889, 0
          %v950 = vadd.f32 %v945, %v948
          %v951 = vadd.f32 %v946, %v948
          %v952 = vpack.c.bf16 %v951, %v950
          %v953 = vld [vmem:[#allocation11] sm:$0xf]
          %v954 = vld [vmem:[#allocation11 + $0x4] sm:$0xf]
          %v955 = vld [vmem:[#allocation11 + $0x8] sm:$0xf]
          %v956 = vld [vmem:[#allocation11 + $0xc] sm:$0xf]
          %v957 = vld [vmem:[#allocation13] sm:$0x1]
          %v959 = vperm.slane %v957, 0
          %v965 = vunpack.c.l.b16 %v953
          %v966 = vunpack.c.l.b16 %v954
          %v967 = vunpack.c.l.b16 %v955
          %v968 = vunpack.c.l.b16 %v956
          %v969 = vpack.c.b16 %v966, %v965
          %v970 = vpack.c.b16 %v968, %v967
          %v974 = vsel %vm890, %v952, 0
          %976 = vmatpush.bf16.msra.mxu0 0
          %977 = vmatpush.bf16.msra.mxu0 0
          %978 = vmatpush.bf16.msra.mxu0 0
          %979 = vmatpush.bf16.msra.mxu0 0
          %980 = vmatpush.bf16.msra.mxu0 0
          %981 = vmatpush.bf16.msra.mxu0 0
          %982 = vmatpush.bf16.msra.mxu0 %v970
          %983 = vmatpush.bf16.msra.mxu0 %v969
          %984 = vmatmul.bf16.gmra.mxu0 %v974
          %v985 = vpop.f32.mrf.mxu0
          %v986 = vadd.f32 %v959, %v985
          %v987 = vpop.f32.mrf.mxu0
          %v988 = vadd.f32 %v959, %v987
          %989 = vdwg.mxu0
          %v990 = vpack.c.bf16 %v986, %v986
          %v991 = vpack.c.bf16 %v988, %v988
          %vm992 = vcmask 257024
          %993 = vst.msk [vmem:[#allocation2] sm:$0xf] %vm992, %v990
          %994 = vst.msk [vmem:[#allocation2 + $0x4] sm:$0xf] %vm992, %v991
          %v995 = vld [vmem:[#allocation14] sm:$0xf]
          %v996 = vld [vmem:[#allocation14 + $0x4] sm:$0xf]
          %v997 = vld [vmem:[#allocation14 + $0x8] sm:$0xf]
          %v998 = vld [vmem:[#allocation14 + $0xc] sm:$0xf]
          %v999 = vld [vmem:[#allocation16] sm:$0x1]
          %v1001 = vperm.slane %v999, 0
          %v1007 = vunpack.c.l.b16 %v995
          %v1008 = vunpack.c.l.b16 %v996
          %v1009 = vunpack.c.l.b16 %v997
          %v1010 = vunpack.c.l.b16 %v998
          %v1011 = vpack.c.b16 %v1008, %v1007
          %v1012 = vpack.c.b16 %v1010, %v1009
          %1015 = vmatpush.bf16.msra.mxu0 0
          %1016 = vmatpush.bf16.msra.mxu0 0
          %1017 = vmatpush.bf16.msra.mxu0 0
          %1018 = vmatpush.bf16.msra.mxu0 0
          %1019 = vmatpush.bf16.msra.mxu0 0
          %1020 = vmatpush.bf16.msra.mxu0 0
          %1021 = vmatpush.bf16.msra.mxu0 %v1012
          %1022 = vmatpush.bf16.msra.mxu0 %v1011
          %1023 = vmatmul.bf16.gmra.mxu0 %v974
          %v1024 = vpop.f32.mrf.mxu0
          %v1025 = vadd.f32 %v1001, %v1024
          %v1026 = vpop.f32.mrf.mxu0
          %v1027 = vadd.f32 %v1001, %v1026
          %1028 = vdwg.mxu0
          %v1029 = vpack.c.bf16 %v1025, %v1025
          %v1030 = vpack.c.bf16 %v1027, %v1027
          %1031 = vst.msk [vmem:[#allocation3] sm:$0xf] %vm992, %v1029
          %1032 = vst.msk [vmem:[#allocation3 + $0x4] sm:$0xf] %vm992, %v1030
        $region164: #{tpu_custom_call.1} parent=103 // pred_fallthru
          _
        %s1033 = smul.u32 %s48, 8
        %s1034 = scalar_lea.vmem %s880, %s1033
        %v1035 = vld [vmem:[%s1034] sm:$0xff]
        %v1036 = vld [vmem:[#allocation5] sm:$0x1]
        %v1037 = vld [vmem:[#allocation8] sm:$0x1]
        %vm1038 = vcmask 261120
        %v1039 = vsel %vm1038, %v1035, 0.0
        %1040 = vadd.xlane.f32.xlu0 %v1039
        %v1041 = vpop.xlane.xlu0 %1040
        %v1042 = vrcp.pop 32.0
        %v1043 = vmul.f32 32.0, %v1042
        %v1044 = vsub.f32 1.0, %v1043
        %v1045 = vmul.f32 %v1042, %v1044
        %v1046 = vadd.f32 %v1042, %v1045
        %vm1047 = vweird.f32 %v1042
        %v1048 = vsel %vm1047, %v1042, %v1046
        %v1049 = vmul.f32 %v1041, %v1048
        %v1050 = vsub.f32 %v1035, %v1049
        %v1051 = vmul.f32 %v1050, %v1050
        %v1052 = vsel %vm1038, %v1051, 0.0
        %1053 = vadd.xlane.f32.xlu0 %v1052
        %v1054 = vpop.xlane.xlu0 %1053
        %v1055 = vmul.f32 %v1054, %v1048
        %v1056 = vadd.f32 %v1055, 1e-05
        %v1057 = vrsqrt.pop %v1056
        %v1058 = vmul.f32 %v1057, %v1056
        %v1059 = vmul.f32 %v1058, %v1057
        %v1060 = vmul.f32 0.5, %v1059
        %v1061 = vsub.f32 1.5, %v1060
        %v1062 = vmul.f32 %v1057, %v1061
        %vm1063 = vweird.f32 %v1056
        %vm1064 = vweird.f32 %v1057
        %vm1065 = vmor %vm1063, %vm1064
        %v1066 = vsel %vm1065, %v1057, %v1062
        %v1067 = vmul.f32 %v1050, %v1066
        %v1069 = vperm.slane %v1036, 0
        %v1071 = vmul.f32 %v1067, %v1069
        %v1073 = vperm.slane %v1037, 0
        %v1075 = vadd.f32 %v1071, %v1073
        %v1076 = vpack.c.bf16 %v1075, %v1075
        %v1077 = vld [vmem:[%s3] sm:$0xf]
        %v1078 = vld [vmem:[%s3 + $0x4] sm:$0xf]
        %v1079 = vld [vmem:[%s3 + $0x8] sm:$0xf]
        %v1080 = vld [vmem:[%s3 + $0xc] sm:$0xf]
        %v1081 = vld [vmem:[#allocation10] sm:$0x1]
        %v1083 = vperm.slane %v1081, 0
        %v1089 = vunpack.c.l.b16 %v1077
        %v1090 = vunpack.c.l.b16 %v1078
        %v1091 = vunpack.c.l.b16 %v1079
        %v1092 = vunpack.c.l.b16 %v1080
        %v1093 = vpack.c.b16 %v1090, %v1089
        %v1094 = vpack.c.b16 %v1092, %v1091
        %v1098 = vsel %vm1038, %v1076, 0
        %1100 = vmatpush.bf16.msra.mxu0 0
        %1101 = vmatpush.bf16.msra.mxu0 0
        %1102 = vmatpush.bf16.msra.mxu0 0
        %1103 = vmatpush.bf16.msra.mxu0 0
        %1104 = vmatpush.bf16.msra.mxu0 0
        %1105 = vmatpush.bf16.msra.mxu0 0
        %1106 = vmatpush.bf16.msra.mxu0 %v1094
        %1107 = vmatpush.bf16.msra.mxu0 %v1093
        %1108 = vmatmul.bf16.gmra.mxu0 %v1098
        %v1109 = vpop.f32.mrf.mxu0
        %v1110 = vadd.f32 %v1083, %v1109
        %v1111 = vpop.f32.mrf.mxu0
        %1112 = vdwg.mxu0
        %v1113 = vpack.c.bf16 %v1110, %v1110
        %v1114 = vld [vmem:[#allocation2] sm:$0xf]
        %v1115 = vld [vmem:[#allocation2 + $0x4] sm:$0xf]
        %v1116 = vld [vmem:[#allocation3] sm:$0xf]
        %v1117 = vld [vmem:[#allocation3 + $0x4] sm:$0xf]
        %v1120 = vunpack.c.l.b16 %v1114
        %v1121 = vunpack.c.l.b16 %v1115
        %v1122 = vpack.c.b16 %v1121, %v1120
        %vm1123 = vcmask 64512
        %v1125 = vsel %vm1123, %v1113, 0
        %v1128 = vsel %vm1123, %v1122, 0
        %1130 = vmatpush.bf16.xpose.msra.mxu0 0
        %1131 = vmatpush.bf16.xpose.msra.mxu0 0
        %1132 = vmatpush.bf16.xpose.msra.mxu0 0
        %1133 = vmatpush.bf16.xpose.msra.mxu0 0
        %1134 = vmatpush.bf16.xpose.msra.mxu0 0
        %1135 = vmatpush.bf16.xpose.msra.mxu0 0
        %1136 = vmatpush.bf16.xpose.msra.mxu0 0
        %1137 = vmatpush.bf16.xpose.msra.mxu0 %v1128
        %1138 = vmatmul.bf16.gmra.mxu0 %v1125
        %v1139 = vpop.f32.mrf.mxu0
        %v1140 = vadd.f32 0.0, %v1139
        %v1141 = vpop.f32.mrf.mxu0
        %1142 = vdwg.mxu0
        %vm1143 = vcmask 130048
        %v1144 = vsel %vm1143, %v1140, -inf
        %1145 = vmax.xlane.f32.xlu0 %v1144
        %v1146 = vpop.xlane.xlu0 %1145
        %v1147 = vsub.f32 %v1140, %v1146
        %v1148 = vmul.f32 %v1147, 1.442695
        %v1149 = vpow.pop %v1148
        %v1150 = vsel %vm1143, %v1149, 0.0
        %1151 = vadd.xlane.f32.xlu0 %v1150
        %v1152 = vpop.xlane.xlu0 %1151
        %v1153 = vrcp.pop %v1152
        %v1154 = vmul.f32 %v1149, %v1153
        %v1155 = vpack.c.bf16 %v1154, %v1154
        %v1158 = vunpack.c.l.b16 %v1116
        %v1159 = vunpack.c.l.b16 %v1117
        %v1160 = vpack.c.b16 %v1159, %v1158
        %v1163 = vsel %vm1143, %v1155, 0
        %1165 = vmatpush.bf16.msra.mxu0 0
        %1166 = vmatpush.bf16.msra.mxu0 0
        %1167 = vmatpush.bf16.msra.mxu0 0
        %1168 = vmatpush.bf16.msra.mxu0 0
        %1169 = vmatpush.bf16.msra.mxu0 0
        %1170 = vmatpush.bf16.msra.mxu0 0
        %1171 = vmatpush.bf16.msra.mxu0 0
        %1172 = vmatpush.bf16.msra.mxu0 %v1160
        %1173 = vmatmul.bf16.gmra.mxu0 %v1163
        %v1174 = vpop.f32.mrf.mxu0
        %v1175 = vadd.f32 0.0, %v1174
        %v1176 = vpop.f32.mrf.mxu0
        %1177 = vdwg.mxu0
        %v1178 = vpack.c.bf16 %v1175, %v1175
        %vm1179 = vcmask 60416
        %1180 = vst.msk [vmem:[#allocation4] sm:$0xf] %vm1179, %v1178
        %v1181 = vld [vmem:[#allocation2] sm:$0xf]
        %v1182 = vld [vmem:[#allocation2 + $0x4] sm:$0xf]
        %v1183 = vld [vmem:[#allocation3] sm:$0xf]
        %v1184 = vld [vmem:[#allocation3 + $0x4] sm:$0xf]
        %1186 = vrot.lane.b32.xlu0 %v1113, 120
        %v1187 = vpop.permute.xlu0 %1186
        %v1190 = vunpack.c.l.b16 %v1181
        %v1191 = vunpack.c.l.b16 %v1182
        %v1192 = vpack.c.b16 %v1191, %v1190
        %1193 = vrot.lane.b32.xlu0 %v1192, 120
        %v1194 = vpop.permute.xlu0 %1193
        %v1196 = vsel %vm1123, %v1187, 0
        %v1199 = vsel %vm1123, %v1194, 0
        %1201 = vmatpush.bf16.xpose.msra.mxu0 0
        %1202 = vmatpush.bf16.xpose.msra.mxu0 0
        %1203 = vmatpush.bf16.xpose.msra.mxu0 0
        %1204 = vmatpush.bf16.xpose.msra.mxu0 0
        %1205 = vmatpush.bf16.xpose.msra.mxu0 0
        %1206 = vmatpush.bf16.xpose.msra.mxu0 0
        %1207 = vmatpush.bf16.xpose.msra.mxu0 0
        %1208 = vmatpush.bf16.xpose.msra.mxu0 %v1199
        %1209 = vmatmul.bf16.gmra.mxu0 %v1196
        %v1210 = vpop.f32.mrf.mxu0
        %v1211 = vadd.f32 0.0, %v1210
        %v1212 = vpop.f32.mrf.mxu0
        %1213 = vdwg.mxu0
        %v1214 = vsel %vm1143, %v1211, -inf
        %1215 = vmax.xlane.f32.xlu0 %v1214
        %v1216 = vpop.xlane.xlu0 %1215
        %v1217 = vsub.f32 %v1211, %v1216
        %v1218 = vmul.f32 %v1217, 1.442695
        %v1219 = vpow.pop %v1218
        %v1220 = vsel %vm1143, %v1219, 0.0
        %1221 = vadd.xlane.f32.xlu0 %v1220
        %v1222 = vpop.xlane.xlu0 %1221
        %v1223 = vrcp.pop %v1222
        %v1224 = vmul.f32 %v1219, %v1223
        %v1225 = vpack.c.bf16 %v1224, %v1224
        %v1228 = vunpack.c.l.b16 %v1183
        %v1229 = vunpack.c.l.b16 %v1184
        %v1230 = vpack.c.b16 %v1229, %v1228
        %1231 = vrot.lane.b32.xlu0 %v1230, 120
        %v1232 = vpop.permute.xlu0 %1231
        %v1235 = vsel %vm1143, %v1225, 0
        %1237 = vmatpush.bf16.msra.mxu0 0
        %1238 = vmatpush.bf16.msra.mxu0 0
        %1239 = vmatpush.bf16.msra.mxu0 0
        %1240 = vmatpush.bf16.msra.mxu0 0
        %1241 = vmatpush.bf16.msra.mxu0 0
        %1242 = vmatpush.bf16.msra.mxu0 0
        %1243 = vmatpush.bf16.msra.mxu0 0
        %1244 = vmatpush.bf16.msra.mxu0 %v1232
        %1245 = vmatmul.bf16.gmra.mxu0 %v1235
        %v1246 = vpop.f32.mrf.mxu0
        %v1247 = vadd.f32 0.0, %v1246
        %v1248 = vpop.f32.mrf.mxu0
        %1249 = vdwg.mxu0
        %v1250 = vpack.c.bf16 %v1247, %v1247
        %1252 = vrot.lane.b32.xlu0 %v1250, 8
        %v1253 = vpop.permute.xlu0 %1252
        %vm1255 = vcmask 126016
        %1256 = vst.msk [vmem:[#allocation4] sm:$0xf] %vm1255, %v1253
        %v1257 = vld [vmem:[#allocation2] sm:$0xf]
        %v1258 = vld [vmem:[#allocation2 + $0x4] sm:$0xf]
        %v1259 = vld [vmem:[#allocation3] sm:$0xf]
        %v1260 = vld [vmem:[#allocation3 + $0x4] sm:$0xf]
        %1261 = vrot.lane.b32.xlu0 %v1113, 112
        %v1262 = vpop.permute.xlu0 %1261
        %v1265 = vunpack.c.l.b16 %v1257
        %v1266 = vunpack.c.l.b16 %v1258
        %v1267 = vpack.c.b16 %v1266, %v1265
        %1268 = vrot.lane.b32.xlu0 %v1267, 112
        %v1269 = vpop.permute.xlu0 %1268
        %v1271 = vsel %vm1123, %v1262, 0
        %v1274 = vsel %vm1123, %v1269, 0
        %1276 = vmatpush.bf16.xpose.msra.mxu0 0
        %1277 = vmatpush.bf16.xpose.msra.mxu0 0
        %1278 = vmatpush.bf16.xpose.msra.mxu0 0
        %1279 = vmatpush.bf16.xpose.msra.mxu0 0
        %1280 = vmatpush.bf16.xpose.msra.mxu0 0
        %1281 = vmatpush.bf16.xpose.msra.mxu0 0
        %1282 = vmatpush.bf16.xpose.msra.mxu0 0
        %1283 = vmatpush.bf16.xpose.msra.mxu0 %v1274
        %1284 = vmatmul.bf16.gmra.mxu0 %v1271
        %v1285 = vpop.f32.mrf.mxu0
        %v1286 = vadd.f32 0.0, %v1285
        %v1287 = vpop.f32.mrf.mxu0
        %1288 = vdwg.mxu0
        %v1289 = vsel %vm1143, %v1286, -inf
        %1290 = vmax.xlane.f32.xlu0 %v1289
        %v1291 = vpop.xlane.xlu0 %1290
        %v1292 = vsub.f32 %v1286, %v1291
        %v1293 = vmul.f32 %v1292, 1.442695
        %v1294 = vpow.pop %v1293
        %v1295 = vsel %vm1143, %v1294, 0.0
        %1296 = vadd.xlane.f32.xlu0 %v1295
        %v1297 = vpop.xlane.xlu0 %1296
        %v1298 = vrcp.pop %v1297
        %v1299 = vmul.f32 %v1294, %v1298
        %v1300 = vpack.c.bf16 %v1299, %v1299
        %v1303 = vunpack.c.l.b16 %v1259
        %v1304 = vunpack.c.l.b16 %v1260
        %v1305 = vpack.c.b16 %v1304, %v1303
        %1306 = vrot.lane.b32.xlu0 %v1305, 112
        %v1307 = vpop.permute.xlu0 %1306
        %v1310 = vsel %vm1143, %v1300, 0
        %1312 = vmatpush.bf16.msra.mxu0 0
        %1313 = vmatpush.bf16.msra.mxu0 0
        %1314 = vmatpush.bf16.msra.mxu0 0
        %1315 = vmatpush.bf16.msra.mxu0 0
        %1316 = vmatpush.bf16.msra.mxu0 0
        %1317 = vmatpush.bf16.msra.mxu0 0
        %1318 = vmatpush.bf16.msra.mxu0 0
        %1319 = vmatpush.bf16.msra.mxu0 %v1307
        %1320 = vmatmul.bf16.gmra.mxu0 %v1310
        %v1321 = vpop.f32.mrf.mxu0
        %v1322 = vadd.f32 0.0, %v1321
        %v1323 = vpop.f32.mrf.mxu0
        %1324 = vdwg.mxu0
        %v1325 = vpack.c.bf16 %v1322, %v1322
        %1327 = vrot.lane.b32.xlu0 %v1325, 16
        %v1328 = vpop.permute.xlu0 %1327
        %vm1330 = vcmask 191616
        %1331 = vst.msk [vmem:[#allocation4] sm:$0xf] %vm1330, %v1328
        %v1332 = vld [vmem:[#allocation2] sm:$0xf]
        %v1333 = vld [vmem:[#allocation2 + $0x4] sm:$0xf]
        %v1334 = vld [vmem:[#allocation3] sm:$0xf]
        %v1335 = vld [vmem:[#allocation3 + $0x4] sm:$0xf]
        %1336 = vrot.lane.b32.xlu0 %v1113, 104
        %v1337 = vpop.permute.xlu0 %1336
        %v1340 = vunpack.c.l.b16 %v1332
        %v1341 = vunpack.c.l.b16 %v1333
        %v1342 = vpack.c.b16 %v1341, %v1340
        %1343 = vrot.lane.b32.xlu0 %v1342, 104
        %v1344 = vpop.permute.xlu0 %1343
        %v1346 = vsel %vm1123, %v1337, 0
        %v1349 = vsel %vm1123, %v1344, 0
        %1351 = vmatpush.bf16.xpose.msra.mxu0 0
        %1352 = vmatpush.bf16.xpose.msra.mxu0 0
        %1353 = vmatpush.bf16.xpose.msra.mxu0 0
        %1354 = vmatpush.bf16.xpose.msra.mxu0 0
        %1355 = vmatpush.bf16.xpose.msra.mxu0 0
        %1356 = vmatpush.bf16.xpose.msra.mxu0 0
        %1357 = vmatpush.bf16.xpose.msra.mxu0 0
        %1358 = vmatpush.bf16.xpose.msra.mxu0 %v1349
        %1359 = vmatmul.bf16.gmra.mxu0 %v1346
        %v1360 = vpop.f32.mrf.mxu0
        %v1361 = vadd.f32 0.0, %v1360
        %v1362 = vpop.f32.mrf.mxu0
        %1363 = vdwg.mxu0
        %v1364 = vsel %vm1143, %v1361, -inf
        %1365 = vmax.xlane.f32.xlu0 %v1364
        %v1366 = vpop.xlane.xlu0 %1365
        %v1367 = vsub.f32 %v1361, %v1366
        %v1368 = vmul.f32 %v1367, 1.442695
        %v1369 = vpow.pop %v1368
        %v1370 = vsel %vm1143, %v1369, 0.0
        %1371 = vadd.xlane.f32.xlu0 %v1370
        %v1372 = vpop.xlane.xlu0 %1371
        %v1373 = vrcp.pop %v1372
        %v1374 = vmul.f32 %v1369, %v1373
        %v1375 = vpack.c.bf16 %v1374, %v1374
        %v1378 = vunpack.c.l.b16 %v1334
        %v1379 = vunpack.c.l.b16 %v1335
        %v1380 = vpack.c.b16 %v1379, %v1378
        %1381 = vrot.lane.b32.xlu0 %v1380, 104
        %v1382 = vpop.permute.xlu0 %1381
        %v1385 = vsel %vm1143, %v1375, 0
        %1387 = vmatpush.bf16.msra.mxu0 0
        %1388 = vmatpush.bf16.msra.mxu0 0
        %1389 = vmatpush.bf16.msra.mxu0 0
        %1390 = vmatpush.bf16.msra.mxu0 0
        %1391 = vmatpush.bf16.msra.mxu0 0
        %1392 = vmatpush.bf16.msra.mxu0 0
        %1393 = vmatpush.bf16.msra.mxu0 0
        %1394 = vmatpush.bf16.msra.mxu0 %v1382
        %1395 = vmatmul.bf16.gmra.mxu0 %v1385
        %v1396 = vpop.f32.mrf.mxu0
        %v1397 = vadd.f32 0.0, %v1396
        %v1398 = vpop.f32.mrf.mxu0
        %1399 = vdwg.mxu0
        %v1400 = vpack.c.bf16 %v1397, %v1397
        %1402 = vrot.lane.b32.xlu0 %v1400, 24
        %v1403 = vpop.permute.xlu0 %1402
        %vm1405 = vcmask 257216
        %1406 = vst.msk [vmem:[#allocation4] sm:$0xf] %vm1405, %v1403
        %v1407 = vld [vmem:[#allocation4] sm:$0xf]
        %v1408 = vld [vmem:[#allocation17] sm:$0xf]
        %v1409 = vld [vmem:[#allocation17 + $0x4] sm:$0xf]
        %v1410 = vld [vmem:[#allocation17 + $0x8] sm:$0xf]
        %v1411 = vld [vmem:[#allocation17 + $0xc] sm:$0xf]
        %v1412 = vld [vmem:[#allocation19] sm:$0x1]
        %v1414 = vperm.slane %v1412, 0
        %v1420 = vunpack.c.l.b16 %v1408
        %v1421 = vunpack.c.l.b16 %v1409
        %v1422 = vunpack.c.l.b16 %v1410
        %v1423 = vunpack.c.l.b16 %v1411
        %v1424 = vpack.c.b16 %v1421, %v1420
        %v1425 = vpack.c.b16 %v1423, %v1422
        %v1429 = vsel %vm1038, %v1407, 0
        %1431 = vmatpush.bf16.msra.mxu0 0
        %1432 = vmatpush.bf16.msra.mxu0 0
        %1433 = vmatpush.bf16.msra.mxu0 0
        %1434 = vmatpush.bf16.msra.mxu0 0
        %1435 = vmatpush.bf16.msra.mxu0 0
        %1436 = vmatpush.bf16.msra.mxu0 0
        %1437 = vmatpush.bf16.msra.mxu0 %v1425
        %1438 = vmatpush.bf16.msra.mxu0 %v1424
        %1439 = vmatmul.bf16.gmra.mxu0 %v1429
        %v1440 = vpop.f32.mrf.mxu0
        %v1441 = vadd.f32 %v1414, %v1440
        %v1442 = vpop.f32.mrf.mxu0
        %1443 = vdwg.mxu0
        %v1444 = vadd.f32 %v1035, %v1441
        %v1445 = vld [vmem:[#allocation20] sm:$0x1]
        %v1446 = vld [vmem:[#allocation22] sm:$0x1]
        %v1447 = vsel %vm1038, %v1444, 0.0
        %1448 = vadd.xlane.f32.xlu0 %v1447
        %v1449 = vpop.xlane.xlu0 %1448
        %v1450 = vmul.f32 %v1449, %v1048
        %v1451 = vsub.f32 %v1444, %v1450
        %v1452 = vmul.f32 %v1451, %v1451
        %v1453 = vsel %vm1038, %v1452, 0.0
        %1454 = vadd.xlane.f32.xlu0 %v1453
        %v1455 = vpop.xlane.xlu0 %1454
        %v1456 = vmul.f32 %v1455, %v1048
        %v1457 = vadd.f32 %v1456, 1e-05
        %v1458 = vrsqrt.pop %v1457
        %v1459 = vmul.f32 %v1458, %v1457
        %v1460 = vmul.f32 %v1459, %v1458
        %v1461 = vmul.f32 0.5, %v1460
        %v1462 = vsub.f32 1.5, %v1461
        %v1463 = vmul.f32 %v1458, %v1462
        %vm1464 = vweird.f32 %v1457
        %vm1465 = vweird.f32 %v1458
        %vm1466 = vmor %vm1464, %vm1465
        %v1467 = vsel %vm1466, %v1458, %v1463
        %v1468 = vmul.f32 %v1451, %v1467
        %v1470 = vperm.slane %v1445, 0
        %v1472 = vmul.f32 %v1468, %v1470
        %v1474 = vperm.slane %v1446, 0
        %v1476 = vadd.f32 %v1472, %v1474
        %v1477 = vpack.c.bf16 %v1476, %v1476
        %v1478 = vld [vmem:[#allocation23] sm:$0xf]
        %v1479 = vld [vmem:[#allocation23 + $0x4] sm:$0xf]
        %v1480 = vld [vmem:[#allocation23 + $0x8] sm:$0xf]
        %v1481 = vld [vmem:[#allocation23 + $0xc] sm:$0xf]
        %v1482 = vld [vmem:[#allocation25] sm:$0x1]
        %v1484 = vperm.slane %v1482, 0
        %v1490 = vunpack.c.l.b16 %v1478
        %v1491 = vunpack.c.l.b16 %v1479
        %v1492 = vunpack.c.l.b16 %v1480
        %v1493 = vunpack.c.l.b16 %v1481
        %v1494 = vpack.c.b16 %v1491, %v1490
        %v1495 = vpack.c.b16 %v1493, %v1492
        %v1499 = vsel %vm1038, %v1477, 0
        %1501 = vmatpush.bf16.msra.mxu0 0
        %1502 = vmatpush.bf16.msra.mxu0 0
        %1503 = vmatpush.bf16.msra.mxu0 0
        %1504 = vmatpush.bf16.msra.mxu0 0
        %1505 = vmatpush.bf16.msra.mxu0 0
        %1506 = vmatpush.bf16.msra.mxu0 0
        %1507 = vmatpush.bf16.msra.mxu0 %v1495
        %1508 = vmatpush.bf16.msra.mxu0 %v1494
        %1509 = vmatmul.bf16.gmra.mxu0 %v1499
        %v1510 = vpop.f32.mrf.mxu0
        %v1511 = vadd.f32 %v1484, %v1510
        %v1512 = vpop.f32.mrf.mxu0
        %1513 = vdwg.mxu0
        %v1514 = vmul.f32 %v1511, 1.702
        %v1515 = vxor.u32 %v1514, 2147483648
        %v1516 = vmul.f32 %v1515, 1.442695
        %v1517 = vpow.pop %v1516
        %v1518 = vadd.f32 %v1517, 1.0
        %v1519 = vrcp.pop %v1518
        %v1520 = vmul.f32 %v1518, %v1519
        %v1521 = vsub.f32 1.0, %v1520
        %v1522 = vmul.f32 %v1519, %v1521
        %v1523 = vadd.f32 %v1519, %v1522
        %vm1524 = vweird.f32 %v1518
        %vm1525 = vweird.f32 %v1519
        %vm1526 = vmor %vm1524, %vm1525
        %v1527 = vsel %vm1526, %v1519, %v1523
        %v1528 = vand.u32 2147483647, %v1518
        %vm1529 = vcmp.eq.f32.partialorder %v1528, 8.507059e+37
        %v1530 = vand.u32 %v1518, 2147483648
        %v1531 = vor.u32 1.1754944e-38, %v1530
        %v1532 = vsel %vm1529, %v1531, %v1527
        %v1533 = vmul.f32 1.0, %v1532
        %v1534 = vmul.f32 %v1511, %v1533
        %v1535 = vpack.c.bf16 %v1534, %v1534
        %v1536 = vld [vmem:[%s15] sm:$0xf]
        %v1537 = vld [vmem:[%s15 + $0x4] sm:$0xf]
        %v1538 = vld [vmem:[%s15 + $0x8] sm:$0xf]
        %v1539 = vld [vmem:[%s15 + $0xc] sm:$0xf]
        %v1540 = vld [vmem:[%s15 + $0x10] sm:$0xf]
        %v1541 = vld [vmem:[%s15 + $0x14] sm:$0xf]
        %v1542 = vld [vmem:[%s15 + $0x18] sm:$0xf]
        %v1543 = vld [vmem:[%s15 + $0x1c] sm:$0xf]
        %v1544 = vld [vmem:[#allocation26] sm:$0x1]
        %v1546 = vperm.slane %v1544, 0
        %v1556 = vunpack.c.l.b16 %v1536
        %v1557 = vunpack.c.l.b16 %v1537
        %v1558 = vunpack.c.l.b16 %v1538
        %v1559 = vunpack.c.l.b16 %v1539
        %v1560 = vunpack.c.l.b16 %v1540
        %v1561 = vunpack.c.l.b16 %v1541
        %v1562 = vunpack.c.l.b16 %v1542
        %v1563 = vunpack.c.l.b16 %v1543
        %v1564 = vpack.c.b16 %v1557, %v1556
        %v1565 = vpack.c.b16 %v1559, %v1558
        %v1566 = vpack.c.b16 %v1561, %v1560
        %v1567 = vpack.c.b16 %v1563, %v1562
        %vm1572 = vcmask 523264
        %v1574 = vsel %vm1572, %v1535, 0
        %1576 = vmatpush.bf16.msra.mxu0 0
        %1577 = vmatpush.bf16.msra.mxu0 0
        %1578 = vmatpush.bf16.msra.mxu0 0
        %1579 = vmatpush.bf16.msra.mxu0 0
        %1580 = vmatpush.bf16.msra.mxu0 %v1567
        %1581 = vmatpush.bf16.msra.mxu0 %v1566
        %1582 = vmatpush.bf16.msra.mxu0 %v1565
        %1583 = vmatpush.bf16.msra.mxu0 %v1564
        %1584 = vmatmul.bf16.gmra.mxu0 %v1574
        %v1585 = vpop.f32.mrf.mxu0
        %v1586 = vadd.f32 %v1546, %v1585
        %v1587 = vpop.f32.mrf.mxu0
        %1588 = vdwg.mxu0
        %v1589 = vadd.f32 %v1444, %v1586
        %v1590 = vpack.c.bf16 %v1589, %v1589
        %v1591 = vld [vmem:[%s17] sm:$0xf]
        %v1592 = vld [vmem:[%s17 + $0x4] sm:$0xf]
        %v1593 = vld [vmem:[%s17 + $0x8] sm:$0xf]
        %v1594 = vld [vmem:[%s17 + $0xc] sm:$0xf]
        %v1595 = vld [vmem:[%s18] sm:$0x1]
        %v1597 = vperm.slane %v1595, 0
        %v1603 = vunpack.c.l.b16 %v1591
        %v1604 = vunpack.c.l.b16 %v1592
        %v1605 = vunpack.c.l.b16 %v1593
        %v1606 = vunpack.c.l.b16 %v1594
        %v1607 = vpack.c.b16 %v1604, %v1603
        %v1608 = vpack.c.b16 %v1606, %v1605
        %v1612 = vsel %vm1038, %v1590, 0
        %1614 = vmatpush.bf16.msra.mxu0 0
        %1615 = vmatpush.bf16.msra.mxu0 0
        %1616 = vmatpush.bf16.msra.mxu0 0
        %1617 = vmatpush.bf16.msra.mxu0 0
        %1618 = vmatpush.bf16.msra.mxu0 0
        %1619 = vmatpush.bf16.msra.mxu0 0
        %1620 = vmatpush.bf16.msra.mxu0 %v1608
        %1621 = vmatpush.bf16.msra.mxu0 %v1607
        %1622 = vmatmul.bf16.gmra.mxu0 %v1612
        %v1623 = vpop.f32.mrf.mxu0
        %v1624 = vadd.f32 %v1597, %v1623
        %v1625 = vpop.f32.mrf.mxu0
        %1626 = vdwg.mxu0
        %v1627 = vld [vmem:[%s19] sm:$0x1]
        %v1628 = vld [vmem:[%s20] sm:$0x1]
        %1629 = vadd.xlane.f32.xlu0 %v1624
        %v1630 = vpop.xlane.xlu0 %1629
        %v1631 = vrcp.pop 48.0
        %v1632 = vmul.f32 48.0, %v1631
        %v1633 = vsub.f32 1.0, %v1632
        %v1634 = vmul.f32 %v1631, %v1633
        %v1635 = vadd.f32 %v1631, %v1634
        %vm1636 = vweird.f32 %v1631
        %v1637 = vsel %vm1636, %v1631, %v1635
        %v1638 = vmul.f32 %v1630, %v1637
        %v1639 = vsub.f32 %v1624, %v1638
        %v1640 = vmul.f32 %v1639, %v1639
        %1641 = vadd.xlane.f32.xlu0 %v1640
        %v1642 = vpop.xlane.xlu0 %1641
        %v1643 = vmul.f32 %v1638, 80.0
        %v1644 = vmul.f32 %v1643, %v1638
        %v1645 = vsub.f32 %v1642, %v1644
        %v1646 = vmul.f32 %v1645, %v1637
        %v1647 = vadd.f32 %v1646, 1e-12
        %v1648 = vrsqrt.pop %v1647
        %v1649 = vmul.f32 %v1648, %v1647
        %v1650 = vmul.f32 %v1649, %v1648
        %v1651 = vmul.f32 0.5, %v1650
        %v1652 = vsub.f32 1.5, %v1651
        %v1653 = vmul.f32 %v1648, %v1652
        %vm1654 = vweird.f32 %v1647
        %vm1655 = vweird.f32 %v1648
        %vm1656 = vmor %vm1654, %vm1655
        %v1657 = vsel %vm1656, %v1648, %v1653
        %v1658 = vmul.f32 %v1639, %v1657
        %v1660 = vperm.slane %v1627, 0
        %v1662 = vmul.f32 %v1658, %v1660
        %v1664 = vperm.slane %v1628, 0
        %v1666 = vadd.f32 %v1662, %v1664
        %1667 = vst [vmem:[%s875] sm:$0xff] %v1666
        %s1668 = sand.u32 %s511, 1
        %s1669 = scalar_lea.sflag [#allocation7], %s1668
        %s1670 = sand.u32 %s511, 1
        %s1671 = smul.addr %s1670, 8
        %s1672 = scalar_lea.vmem [#allocation28], %s1671
        // Predicated region
        $region165: #{tpu_custom_call.1} parent=103 // pred_check
          %p1673 = pneg %p521
        $region166: #{tpu_custom_call.1} parent=103 // pred_check_branch
          %1675 = sbr.rel (%p1673) target = $region168
        $region167: #{tpu_custom_call.1} parent=103 // pred_region
          %1677 = vsyncadd %s1669, 0
          %s1678 = smul.addr %s47, 2
          %s1679 = sadd.s32 %s48, %s1678
          %s1680 = smul.addr %s1679, 8
          %s1681 = scalar_lea.hbm %s21, %s1680
          %s1683 = sshll.u32 %s1672, 4
          %s1684 = int_to_ptr.vmem [resolvable:$true] %s1683
          %s1685 = sshll.u32 %s1681, 4
          %s1686 = int_to_ptr.hbm [resolvable:$true] %s1685
          %1688 = dma.vmem_to_hbm [thread:$0]  %s1684, 128, %s1686, %s1669
        $region168: #{tpu_custom_call.1} parent=103 // pred_fallthru
          _
      $region104: #{tpu_custom_call.1} parent=5 // pred_fallthru
        _
      %p1689 = scmp.le.s32.totalorder 2, %s38
      // Predicated region
      $region169: #{tpu_custom_call.1} parent=5 // pred_check
        %p1690 = pneg %p1689
      $region170: #{tpu_custom_call.1} parent=5 // pred_check_branch
        %1692 = sbr.rel (%p1690) target = $region172
      $region171: #{tpu_custom_call.1} parent=5 // pred_region
        %s1693 = ssub.s32 %s38, 2
        // Predicated region
        $region173: #{tpu_custom_call.1} parent=171 // pred_check
          %p1694 = pneg %p527
        $region174: #{tpu_custom_call.1} parent=171 // pred_check_branch
          %1696 = sbr.rel (%p1694) target = $region176
        $region175: #{tpu_custom_call.1} parent=171 // pred_region
          %s1697 = sand.u32 %s512, 1
          %s1698 = scalar_lea.sflag [#allocation7], %s1697
          %s1699 = sand.u32 %s512, 1
          %s1700 = smul.addr %s1699, 8
          %s1701 = scalar_lea.vmem [#allocation28], %s1700
          %1703 = dma.done %s1698, 128
        $region176: #{tpu_custom_call.1} parent=171 // pred_fallthru
          _
      $region172: #{tpu_custom_call.1} parent=5 // pred_fallthru
        _
    $region6: #{tpu_custom_call.1} parent=1 // loop_footer
      %s42 = sadd.s32 1, %s38
    $region7: #{tpu_custom_call.1} parent=1 // loop_footer_branch
      %37 = sbr.rel target = $region3
    $region8: #{tpu_custom_call.1} parent=1 // loop_exit
      _
    %1704 = vsyncpa [#allocation6], 1
    %s1705 = scalar_lea.sflag [#allocation6], 1
    %1706 = vsyncpa %s1705, 1
    %1707 = vsyncpa [#allocation9], 1
    %1708 = vsyncpa [#allocation12], 1
    %1709 = vsyncpa [#allocation15], 1
    %1710 = vsyncpa [#allocation18], 1
    %1711 = vsyncpa [#allocation21], 1
    %1712 = vsyncpa [#allocation24], 1
    %1713 = vsyncpa [#allocation27], 1
    %1714 = vsyncpa [#allocation7], 1
    %s1715 = scalar_lea.sflag [#allocation7], 1
    %1716 = vsyncpa %s1715, 1

</llo_original>
